<compile_context>
chip_gen: v7x
topology: tpu7x:2x2x1
jax: 0.10.0
libtpu: 0.0.40
codegen_flags: <defaults>
</compile_context>

<pallas_src>
import numpy as np
import jax
import jax.numpy as jnp
from jax import lax
from jax.experimental import pallas as pl
from jax.experimental.pallas import tpu as pltpu


MXU_DTYPE = jnp.bfloat16   # matmul operand dtype (f32 accumulation everywhere)


def _round_up(x, m):
    return ((x + m - 1) // m) * m


# ---------------------------------------------------------------------------
# Glue: torch.nn.Unfold / F.fold equivalents, transposed so the patch index is
# the trailing (lane) dimension.  Column ordering matches PyTorch (channel-
# major, then kernel-row, then kernel-col; patch positions row-major).
# ---------------------------------------------------------------------------
def unfold_t(x, p):
    """(N, C, H, W) -> (d, N, P) with d = C*p*p, P = (H-p+1)*(W-p+1)."""
    N, C, H, W = x.shape
    oh, ow = H - p + 1, W - p + 1
    cols = []
    for c in range(C):
        for ki in range(p):
            for kj in range(p):
                cols.append(x[:, c, ki:ki + oh, kj:kj + ow].reshape(N, oh * ow))
    return jnp.stack(cols, axis=0)          # (d, N, P)


def fold_t(cols, p, H, W, C):
    """(d, N, P) -> (N, C, H, W) overlap-add (torch.nn.functional.fold).

    Implemented as independent padded shifts + one tree-sum (no serialized
    scatter-add chain)."""
    N = cols.shape[1]
    oh, ow = H - p + 1, W - p + 1
    per_chan = []
    for c in range(C):
        shifts = []
        for ki in range(p):
            for kj in range(p):
                idx = (c * p + ki) * p + kj
                patch = cols[idx].reshape(N, oh, ow)
                shifts.append(jnp.pad(
                    patch, ((0, 0), (ki, p - 1 - ki), (kj, p - 1 - kj))))
        per_chan.append(jnp.sum(jnp.stack(shifts, axis=0), axis=0))   # (N,H,W)
    return jnp.stack(per_chan, axis=1)                                # (N,C,H,W)


def fold_count(p, H, W, C, dtype=jnp.float32):
    """Analytic F.fold(ones): how many patches cover each output pixel."""
    ys = jnp.arange(H)
    xs = jnp.arange(W)
    ch = jnp.minimum(jnp.minimum(ys + 1, p),
                     jnp.minimum(H - ys, H - p + 1)).astype(dtype)
    cw = jnp.minimum(jnp.minimum(xs + 1, p),
                     jnp.minimum(W - xs, W - p + 1)).astype(dtype)
    cnt = ch[:, None] * cw[None, :]                                   # (H, W)
    return jnp.broadcast_to(cnt[None, None], (1, C, H, W))


# ---------------------------------------------------------------------------
# Pallas kernel: one denoiser stage on a (d, TN) tile of transposed patches.
# ---------------------------------------------------------------------------
def make_stage_kernel(T, min_v, max_v, inv_c, w_scale, H1):
    T = int(T)
    min_v = float(min_v)
    max_v = float(max_v)
    inv_c = float(inv_c)
    w_scale = float(w_scale)

    def kernel(ut_ref, wpackT_ref, b1_ref, w2T_ref, b2_ref, w3T_ref, b3_ref,
               w4c_ref, b4c_ref, st_ref, dict_ref, o_ref):
        u = ut_ref[...]                                            # (d, TN) bf16

        # Fused [linear1 ; Dict] projection: one (H1+L, d) @ (d, TN) matmul.
        hy = jnp.dot(wpackT_ref[...], u,
                     preferred_element_type=jnp.float32)           # (H1+L, TN)
        h = jnp.maximum(hy[:H1] + b1_ref[...], 0.0)                # (H1, TN)
        y = hy[H1:]                                                # (L,  TN)

        # Remaining lambda-MLP layers (ReLU == clamp(min=0)), f32 elementwise.
        h = jnp.maximum(
            jnp.dot(w2T_ref[...], h.astype(MXU_DTYPE),
                    preferred_element_type=jnp.float32) + b2_ref[...], 0.0)
        h = jnp.maximum(
            jnp.dot(w3T_ref[...], h.astype(MXU_DTYPE),
                    preferred_element_type=jnp.float32) + b3_ref[...], 0.0)

        # lambda / c via VPU multiply + sublane (XLU) reduce -> (1, TN).
        l = jnp.sum(h * w4c_ref[...], axis=0, keepdims=True) + b4c_ref[...]

        # Loop invariants hoisted out of the unrolled ISTA iterations.
        l_full = jnp.broadcast_to(l, y.shape)                      # (L, TN)
        y_c = y * inv_c
        st = st_ref[...]                                           # (L, L)

        # Exact soft-threshold without sign()*m: m = max(|v|-l, 0), then a
        # nested where.  Bit-exact vs sign(v)*m, including v == 0 and negative
        # lambda, and one fewer (L, TN) multiply per call.
        def soft(v):
            m = jnp.maximum(jnp.abs(v) - l_full, 0.0)
            return jnp.where(v > 0, m, jnp.where(v < 0, -m, 0.0))

        z = soft(y)

        def body(t, z):
            return soft(jnp.dot(st, z.astype(MXU_DTYPE),
                                preferred_element_type=jnp.float32) + y_c)

        z = lax.fori_loop(0, T, body, z, unroll=True)

        # Reconstruction Dict @ z, clamp, optional patch weight; lane-dense store.
        xp = jnp.dot(dict_ref[...], z.astype(MXU_DTYPE),
                     preferred_element_type=jnp.float32)           # (d, TN)
        xp = jnp.clip(xp, min_v, max_v)
        if w_scale != 1.0:                                         # trace-time branch
            xp = xp * w_scale
        o_ref[...] = xp.astype(o_ref.dtype)

    return kernel


def _choose_tile(rows, target_tn):
    """Lane-tile width (multiple of 128) minimizing padded columns while
    keeping >= 2 (preferably even) blocks so the 1-D 'parallel' grid can split
    across v7x's two TensorCores."""
    rows128 = _round_up(rows, 128)
    nb = max(1, pl.cdiv(rows128, int(target_tn)))
    if rows128 >= 2 * 128:
        nb = max(nb, 2)
        if nb % 2:
            nb += 1
    tn = _round_up(pl.cdiv(rows128, nb), 128)
    nb = pl.cdiv(rows128, tn)
    return tn, nb, nb * tn


def stage_patches(UT, consts, kernel, TN=4096):
    """UT: (d, rows) transposed patch matrix -> (d, rows) denoised patches."""
    d, rows = UT.shape
    tn, num_blocks, rows_pad = _choose_tile(rows, TN)
    # Feed the kernel bf16 patches (halves input DMA/VMEM, removes the
    # per-step in-kernel f32->bf16 cast); cast before padding.
    UT_pad = jnp.pad(UT.astype(MXU_DTYPE), ((0, 0), (0, rows_pad - rows)))
    # VMEM per step stays in the low MiB even at TN=4096, far under the 32 MiB
    # scoped limit below (which is also safe on v7x's 64 MiB physical VMEM).

    def full2(a):
        return pl.BlockSpec(a.shape, lambda i: (0, 0))

    out = pl.pallas_call(
        kernel,
        out_shape=jax.ShapeDtypeStruct((d, rows_pad), jnp.float32),
        grid_spec=pltpu.PrefetchScalarGridSpec(
            num_scalar_prefetch=0,
            grid=(num_blocks,),
            in_specs=[pl.BlockSpec((d, tn), lambda i: (0, i))]
                     + [full2(a) for a in consts],
            out_specs=pl.BlockSpec((d, tn), lambda i: (0, i)),
        ),
        compiler_params=pltpu.CompilerParams(
            dimension_semantics=("parallel",),
            vmem_limit_bytes=32 * 1024 * 1024),
    )(UT_pad, *consts)
    return out[:, :rows]


# ---------------------------------------------------------------------------
# Full forward (two stages), mirroring DenoisingNet_MLP_2.forward.
# ---------------------------------------------------------------------------
def _prepare_stage_consts(mlp, Dict, c):
    """Host/JAX-side packing of per-stage kernel constants (transposed layout)."""
    W1, b1, W2, b2, W3, b3, W4, b4 = mlp
    L = Dict.shape[1]
    wpackT = jnp.concatenate([W1, Dict], axis=1).T.astype(MXU_DTYPE)   # (H1+L, d)
    w2T = W2.T.astype(MXU_DTYPE)                                       # (H2, H1)
    w3T = W3.T.astype(MXU_DTYPE)                                       # (H3, H2)
    b1c = b1.reshape(-1, 1).astype(jnp.float32)                        # (H1, 1)
    b2c = b2.reshape(-1, 1).astype(jnp.float32)                        # (H2, 1)
    b3c = b3.reshape(-1, 1).astype(jnp.float32)                        # (H3, 1)
    w4c = (W4 / c).astype(jnp.float32)                                 # (H3, 1)
    b4c = (b4 / c).reshape(1, 1).astype(jnp.float32)                   # (1, 1)
    # S = (I - D^T D / c)^T is symmetric, so S^T (needed in the transposed
    # recurrence S^T @ z^T) equals I - D^T D / c.
    st = (jnp.eye(L, dtype=jnp.float32)
          - (Dict.T @ Dict) / c).astype(MXU_DTYPE)                     # (L, L)
    dict_b = Dict.astype(MXU_DTYPE)                                    # (d, L)
    return (wpackT, b1c, w2T, b2c, w3T, b3c, w4c, b4c, st, dict_b)


def denoising_net_mlp_2_forward(x, params, TN=4096):
    p = params["patch_size"]
    T = params["T"]
    min_v, max_v = params["min_v"], params["max_v"]
    Dict = params["Dict"]
    c = params["c"]
    N, C, H, W = x.shape
    d = C * p * p
    H1 = params["mlp1"][0].shape[1]
    inv_c = 1.0 / float(c)

    P = (H - p + 1) * (W - p + 1)
    # Overlap-add normalization depends only on (H, W, p, C): analytic count,
    # shared by both stages (w_scale kept only to match PyTorch exactly).
    count = fold_count(p, H, W, C)                                     # (1,C,H,W)

    def one_stage(img, mlp, w_scale):
        UT = unfold_t(img, p).reshape(d, N * P)                        # (d, N*P)
        consts = _prepare_stage_consts(mlp, Dict, c)
        kernel = make_stage_kernel(T, min_v, max_v, inv_c, w_scale, H1)
        xpT = stage_patches(UT, consts, kernel, TN=TN)                 # (d, N*P)
        fold = fold_t(xpT.reshape(d, N, P), p, H, W, C)
        norm = count if float(w_scale) == 1.0 else count * float(w_scale)
        return fold / norm

    res = one_stage(x, params["mlp1"], params["w_1"])
    res = one_stage(res, params["mlp2"], params["w_2"])
    return res


# ---------------------------------------------------------------------------
# Deterministic parameter construction (synthetic; shapes follow __init__).
# ---------------------------------------------------------------------------
def init_params(key, patch_size=4, C=1, H1=32, H2=32, H3=16, D_out_lam=1,
                L=32, T=3, min_v=-1.0, max_v=1.0):
    d = C * patch_size * patch_size
    keys = jax.random.split(key, 16)

    Dict = jax.random.normal(keys[0], (d, L), jnp.float32)
    Dict = Dict / jnp.linalg.norm(Dict, axis=0, keepdims=True)
    # c > ||D^T D||_2 so the ISTA iterations stay well-behaved
    c = float(np.linalg.norm(np.asarray(Dict), 2) ** 2 * 1.1 + 0.1)

    def lin(k, din, dout, scale=0.1):
        kw, kb = jax.random.split(k)
        Wm = jax.random.normal(kw, (din, dout), jnp.float32) * scale
        bm = jax.random.normal(kb, (1, dout), jnp.float32) * 0.01
        return Wm, bm

    dims = [(d, H1), (H1, H2), (H2, H3), (H3, D_out_lam)]
    mlp1, mlp2 = [], []
    for i, (di, do) in enumerate(dims):
        Wm, bm = lin(keys[1 + i], di, do)
        mlp1 += [Wm, bm]
    for i, (di, do) in enumerate(dims):
        Wm, bm = lin(keys[8 + i], di, do)
        mlp2 += [Wm, bm]

    return dict(patch_size=patch_size, T=T, min_v=min_v, max_v=max_v,
                Dict=Dict, c=c, w_1=1.0, w_2=1.0,
                mlp1=tuple(mlp1), mlp2=tuple(mlp2))


if __name__ == "__main__":
    key = jax.random.PRNGKey(0)
    kx, kp = jax.random.split(key)
    params = init_params(kp)
    # small NCHW input consistent with the module (grayscale denoising,
    # D_in = patch_size^2 = 16)
    x = jax.random.uniform(kx, (2, 1, 16, 16), dtype=jnp.float32)

    fwd = jax.jit(lambda xx: denoising_net_mlp_2_forward(xx, params))
    out = fwd(x)
    out = jax.block_until_ready(out)

    assert out.shape == x.shape, out.shape
    assert bool(jnp.all(jnp.isfinite(out)))
    print("KERNEL_OK")
</pallas_src>

<mosaic_0001>
module attributes {stable_mosaic.version = 11 : i64} {
  func.func @kernel(%arg0: i32, %arg1: memref<16x256xbf16, #tpu.memory_space<vmem>>, %arg2: memref<64x16xbf16, #tpu.memory_space<vmem>>, %arg3: memref<32x1xf32, #tpu.memory_space<vmem>>, %arg4: memref<32x32xbf16, #tpu.memory_space<vmem>>, %arg5: memref<32x1xf32, #tpu.memory_space<vmem>>, %arg6: memref<16x32xbf16, #tpu.memory_space<vmem>>, %arg7: memref<16x1xf32, #tpu.memory_space<vmem>>, %arg8: memref<16x1xf32, #tpu.memory_space<vmem>>, %arg9: memref<1x1xf32, #tpu.memory_space<vmem>>, %arg10: memref<32x32xbf16, #tpu.memory_space<vmem>>, %arg11: memref<16x32xbf16, #tpu.memory_space<vmem>>, %arg12: memref<16x256xf32, #tpu.memory_space<vmem>>) attributes {dimension_semantics = [#tpu.dimension_semantics<parallel>], iteration_bounds = array<i64: 2>, scalar_prefetch = 0 : i64, scratch_operands = 0 : i64, tpu.core_type = #tpu.core_type<tc>, window_params = [{transform_indices = @transform_0, window_bounds = array<i64: 16, 256>}, {pipeline_mode = #tpu.pipeline_mode<synchronous>, transform_indices = @transform_1, window_bounds = array<i64: 64, 16>}, {pipeline_mode = #tpu.pipeline_mode<synchronous>, transform_indices = @transform_2, window_bounds = array<i64: 32, 1>}, {pipeline_mode = #tpu.pipeline_mode<synchronous>, transform_indices = @transform_3, window_bounds = array<i64: 32, 32>}, {pipeline_mode = #tpu.pipeline_mode<synchronous>, transform_indices = @transform_4, window_bounds = array<i64: 32, 1>}, {pipeline_mode = #tpu.pipeline_mode<synchronous>, transform_indices = @transform_5, window_bounds = array<i64: 16, 32>}, {pipeline_mode = #tpu.pipeline_mode<synchronous>, transform_indices = @transform_6, window_bounds = array<i64: 16, 1>}, {pipeline_mode = #tpu.pipeline_mode<synchronous>, transform_indices = @transform_7, window_bounds = array<i64: 16, 1>}, {pipeline_mode = #tpu.pipeline_mode<synchronous>, transform_indices = @transform_8, window_bounds = array<i64: 1, 1>}, {pipeline_mode = #tpu.pipeline_mode<synchronous>, transform_indices = @transform_9, window_bounds = array<i64: 32, 32>}, {pipeline_mode = #tpu.pipeline_mode<synchronous>, transform_indices = @transform_10, window_bounds = array<i64: 16, 32>}, {transform_indices = @transform_11, window_bounds = array<i64: 16, 256>}]} {
    %c0 = arith.constant 0 : index
    %c0_0 = arith.constant 0 : index
    %0 = vector.load %arg1[%c0, %c0_0] : memref<16x256xbf16, #tpu.memory_space<vmem>>, vector<16x256xbf16>
    %c0_1 = arith.constant 0 : index
    %c0_2 = arith.constant 0 : index
    %1 = vector.load %arg2[%c0_1, %c0_2] : memref<64x16xbf16, #tpu.memory_space<vmem>>, vector<64x16xbf16>
    %cst = arith.constant dense<0.000000e+00> : vector<64x256xf32>
    %2 = tpu.matmul %1, %0, %cst {dimension_numbers = #tpu.dot_dimension_numbers<[1], [0], [0], [1], [0, 0, 1, 1], [], []>} : vector<64x16xbf16>, vector<16x256xbf16>, vector<64x256xf32> -> vector<64x256xf32>
    %3 = vector.extract_strided_slice %2 {offsets = [0, 0], sizes = [32, 256], strides = [1, 1]} : vector<64x256xf32> to vector<32x256xf32>
    %c0_3 = arith.constant 0 : index
    %c0_4 = arith.constant 0 : index
    %4 = vector.load %arg3[%c0_3, %c0_4] : memref<32x1xf32, #tpu.memory_space<vmem>>, vector<32x1xf32>
    %5 = vector.broadcast %4 : vector<32x1xf32> to vector<32x256xf32>
    %6 = arith.addf %3, %5 : vector<32x256xf32>
    %cst_5 = arith.constant 0.000000e+00 : f32
    %7 = vector.broadcast %cst_5 : f32 to vector<32x256xf32>
    %8 = arith.maximumf %6, %7 : vector<32x256xf32>
    %9 = vector.extract_strided_slice %2 {offsets = [32, 0], sizes = [32, 256], strides = [1, 1]} : vector<64x256xf32> to vector<32x256xf32>
    %c0_6 = arith.constant 0 : index
    %c0_7 = arith.constant 0 : index
    %10 = vector.load %arg4[%c0_6, %c0_7] : memref<32x32xbf16, #tpu.memory_space<vmem>>, vector<32x32xbf16>
    %11 = arith.truncf %8 : vector<32x256xf32> to vector<32x256xbf16>
    %cst_8 = arith.constant dense<0.000000e+00> : vector<32x256xf32>
    %12 = tpu.matmul %10, %11, %cst_8 {dimension_numbers = #tpu.dot_dimension_numbers<[1], [0], [0], [1], [0, 0, 1, 1], [], []>} : vector<32x32xbf16>, vector<32x256xbf16>, vector<32x256xf32> -> vector<32x256xf32>
    %c0_9 = arith.constant 0 : index
    %c0_10 = arith.constant 0 : index
    %13 = vector.load %arg5[%c0_9, %c0_10] : memref<32x1xf32, #tpu.memory_space<vmem>>, vector<32x1xf32>
    %14 = vector.broadcast %13 : vector<32x1xf32> to vector<32x256xf32>
    %15 = arith.addf %12, %14 : vector<32x256xf32>
    %cst_11 = arith.constant 0.000000e+00 : f32
    %16 = vector.broadcast %cst_11 : f32 to vector<32x256xf32>
    %17 = arith.maximumf %15, %16 : vector<32x256xf32>
    %c0_12 = arith.constant 0 : index
    %c0_13 = arith.constant 0 : index
    %18 = vector.load %arg6[%c0_12, %c0_13] : memref<16x32xbf16, #tpu.memory_space<vmem>>, vector<16x32xbf16>
    %19 = arith.truncf %17 : vector<32x256xf32> to vector<32x256xbf16>
    %cst_14 = arith.constant dense<0.000000e+00> : vector<16x256xf32>
    %20 = tpu.matmul %18, %19, %cst_14 {dimension_numbers = #tpu.dot_dimension_numbers<[1], [0], [0], [1], [0, 0, 1, 1], [], []>} : vector<16x32xbf16>, vector<32x256xbf16>, vector<16x256xf32> -> vector<16x256xf32>
    %c0_15 = arith.constant 0 : index
    %c0_16 = arith.constant 0 : index
    %21 = vector.load %arg7[%c0_15, %c0_16] : memref<16x1xf32, #tpu.memory_space<vmem>>, vector<16x1xf32>
    %22 = vector.broadcast %21 : vector<16x1xf32> to vector<16x256xf32>
    %23 = arith.addf %20, %22 : vector<16x256xf32>
    %cst_17 = arith.constant 0.000000e+00 : f32
    %24 = vector.broadcast %cst_17 : f32 to vector<16x256xf32>
    %25 = arith.maximumf %23, %24 : vector<16x256xf32>
    %c0_18 = arith.constant 0 : index
    %c0_19 = arith.constant 0 : index
    %26 = vector.load %arg8[%c0_18, %c0_19] : memref<16x1xf32, #tpu.memory_space<vmem>>, vector<16x1xf32>
    %27 = vector.broadcast %26 : vector<16x1xf32> to vector<16x256xf32>
    %28 = arith.mulf %25, %27 : vector<16x256xf32>
    %cst_20 = arith.constant dense<0.000000e+00> : vector<256xf32>
    %29 = vector.multi_reduction <add>, %28, %cst_20 [0] : vector<16x256xf32> to vector<256xf32>
    %30 = vector.shape_cast %29 : vector<256xf32> to vector<1x256xf32>
    %c0_21 = arith.constant 0 : index
    %c0_22 = arith.constant 0 : index
    %31 = vector.load %arg9[%c0_21, %c0_22] : memref<1x1xf32, #tpu.memory_space<vmem>>, vector<1x1xf32>
    %32 = vector.broadcast %31 : vector<1x1xf32> to vector<1x256xf32>
    %33 = arith.addf %30, %32 : vector<1x256xf32>
    %34 = vector.shape_cast %33 : vector<1x256xf32> to vector<1x256xf32>
    %35 = vector.broadcast %34 : vector<1x256xf32> to vector<32x256xf32>
    %cst_23 = arith.constant 0.206805974 : f32
    %36 = vector.broadcast %cst_23 : f32 to vector<32x256xf32>
    %37 = arith.mulf %9, %36 : vector<32x256xf32>
    %c0_24 = arith.constant 0 : index
    %c0_25 = arith.constant 0 : index
    %38 = vector.load %arg10[%c0_24, %c0_25] : memref<32x32xbf16, #tpu.memory_space<vmem>>, vector<32x32xbf16>
    %39 = math.absf %9 : vector<32x256xf32>
    %40 = arith.subf %39, %35 : vector<32x256xf32>
    %cst_26 = arith.constant 0.000000e+00 : f32
    %41 = vector.broadcast %cst_26 : f32 to vector<32x256xf32>
    %42 = arith.maximumf %40, %41 : vector<32x256xf32>
    %cst_27 = arith.constant 0.000000e+00 : f32
    %43 = vector.broadcast %cst_27 : f32 to vector<32x256xf32>
    %44 = arith.cmpf ogt, %9, %43 : vector<32x256xf32>
    %cst_28 = arith.constant 0.000000e+00 : f32
    %45 = vector.broadcast %cst_28 : f32 to vector<32x256xf32>
    %46 = arith.cmpf olt, %9, %45 : vector<32x256xf32>
    %cst_29 = arith.constant 0.000000e+00 : f32
    %47 = vector.broadcast %cst_29 : f32 to vector<32x256xf32>
    %48 = arith.subf %47, %42 : vector<32x256xf32>
    %cst_30 = arith.constant 0.000000e+00 : f32
    %49 = vector.broadcast %cst_30 : f32 to vector<32x256xf32>
    %50 = arith.select %46, %48, %49 : vector<32x256xi1>, vector<32x256xf32>
    %51 = arith.select %44, %42, %50 : vector<32x256xi1>, vector<32x256xf32>
    %c0_i32 = arith.constant 0 : i32
    %52 = arith.truncf %51 : vector<32x256xf32> to vector<32x256xbf16>
    %cst_31 = arith.constant dense<0.000000e+00> : vector<32x256xf32>
    %53 = tpu.matmul %38, %52, %cst_31 {dimension_numbers = #tpu.dot_dimension_numbers<[1], [0], [0], [1], [0, 0, 1, 1], [], []>} : vector<32x32xbf16>, vector<32x256xbf16>, vector<32x256xf32> -> vector<32x256xf32>
    %54 = arith.addf %53, %37 : vector<32x256xf32>
    %55 = math.absf %54 : vector<32x256xf32>
    %56 = arith.subf %55, %35 : vector<32x256xf32>
    %cst_32 = arith.constant 0.000000e+00 : f32
    %57 = vector.broadcast %cst_32 : f32 to vector<32x256xf32>
    %58 = arith.maximumf %56, %57 : vector<32x256xf32>
    %cst_33 = arith.constant 0.000000e+00 : f32
    %59 = vector.broadcast %cst_33 : f32 to vector<32x256xf32>
    %60 = arith.cmpf ogt, %54, %59 : vector<32x256xf32>
    %cst_34 = arith.constant 0.000000e+00 : f32
    %61 = vector.broadcast %cst_34 : f32 to vector<32x256xf32>
    %62 = arith.cmpf olt, %54, %61 : vector<32x256xf32>
    %cst_35 = arith.constant 0.000000e+00 : f32
    %63 = vector.broadcast %cst_35 : f32 to vector<32x256xf32>
    %64 = arith.subf %63, %58 : vector<32x256xf32>
    %cst_36 = arith.constant 0.000000e+00 : f32
    %65 = vector.broadcast %cst_36 : f32 to vector<32x256xf32>
    %66 = arith.select %62, %64, %65 : vector<32x256xi1>, vector<32x256xf32>
    %67 = arith.select %60, %58, %66 : vector<32x256xi1>, vector<32x256xf32>
    %c1_i32 = arith.constant 1 : i32
    %68 = arith.truncf %67 : vector<32x256xf32> to vector<32x256xbf16>
    %cst_37 = arith.constant dense<0.000000e+00> : vector<32x256xf32>
    %69 = tpu.matmul %38, %68, %cst_37 {dimension_numbers = #tpu.dot_dimension_numbers<[1], [0], [0], [1], [0, 0, 1, 1], [], []>} : vector<32x32xbf16>, vector<32x256xbf16>, vector<32x256xf32> -> vector<32x256xf32>
    %70 = arith.addf %69, %37 : vector<32x256xf32>
    %71 = math.absf %70 : vector<32x256xf32>
    %72 = arith.subf %71, %35 : vector<32x256xf32>
    %cst_38 = arith.constant 0.000000e+00 : f32
    %73 = vector.broadcast %cst_38 : f32 to vector<32x256xf32>
    %74 = arith.maximumf %72, %73 : vector<32x256xf32>
    %cst_39 = arith.constant 0.000000e+00 : f32
    %75 = vector.broadcast %cst_39 : f32 to vector<32x256xf32>
    %76 = arith.cmpf ogt, %70, %75 : vector<32x256xf32>
    %cst_40 = arith.constant 0.000000e+00 : f32
    %77 = vector.broadcast %cst_40 : f32 to vector<32x256xf32>
    %78 = arith.cmpf olt, %70, %77 : vector<32x256xf32>
    %cst_41 = arith.constant 0.000000e+00 : f32
    %79 = vector.broadcast %cst_41 : f32 to vector<32x256xf32>
    %80 = arith.subf %79, %74 : vector<32x256xf32>
    %cst_42 = arith.constant 0.000000e+00 : f32
    %81 = vector.broadcast %cst_42 : f32 to vector<32x256xf32>
    %82 = arith.select %78, %80, %81 : vector<32x256xi1>, vector<32x256xf32>
    %83 = arith.select %76, %74, %82 : vector<32x256xi1>, vector<32x256xf32>
    %c2_i32 = arith.constant 2 : i32
    %84 = arith.truncf %83 : vector<32x256xf32> to vector<32x256xbf16>
    %cst_43 = arith.constant dense<0.000000e+00> : vector<32x256xf32>
    %85 = tpu.matmul %38, %84, %cst_43 {dimension_numbers = #tpu.dot_dimension_numbers<[1], [0], [0], [1], [0, 0, 1, 1], [], []>} : vector<32x32xbf16>, vector<32x256xbf16>, vector<32x256xf32> -> vector<32x256xf32>
    %86 = arith.addf %85, %37 : vector<32x256xf32>
    %87 = math.absf %86 : vector<32x256xf32>
    %88 = arith.subf %87, %35 : vector<32x256xf32>
    %cst_44 = arith.constant 0.000000e+00 : f32
    %89 = vector.broadcast %cst_44 : f32 to vector<32x256xf32>
    %90 = arith.maximumf %88, %89 : vector<32x256xf32>
    %cst_45 = arith.constant 0.000000e+00 : f32
    %91 = vector.broadcast %cst_45 : f32 to vector<32x256xf32>
    %92 = arith.cmpf ogt, %86, %91 : vector<32x256xf32>
    %cst_46 = arith.constant 0.000000e+00 : f32
    %93 = vector.broadcast %cst_46 : f32 to vector<32x256xf32>
    %94 = arith.cmpf olt, %86, %93 : vector<32x256xf32>
    %cst_47 = arith.constant 0.000000e+00 : f32
    %95 = vector.broadcast %cst_47 : f32 to vector<32x256xf32>
    %96 = arith.subf %95, %90 : vector<32x256xf32>
    %cst_48 = arith.constant 0.000000e+00 : f32
    %97 = vector.broadcast %cst_48 : f32 to vector<32x256xf32>
    %98 = arith.select %94, %96, %97 : vector<32x256xi1>, vector<32x256xf32>
    %99 = arith.select %92, %90, %98 : vector<32x256xi1>, vector<32x256xf32>
    %c0_49 = arith.constant 0 : index
    %c0_50 = arith.constant 0 : index
    %100 = vector.load %arg11[%c0_49, %c0_50] : memref<16x32xbf16, #tpu.memory_space<vmem>>, vector<16x32xbf16>
    %101 = arith.truncf %99 : vector<32x256xf32> to vector<32x256xbf16>
    %cst_51 = arith.constant dense<0.000000e+00> : vector<16x256xf32>
    %102 = tpu.matmul %100, %101, %cst_51 {dimension_numbers = #tpu.dot_dimension_numbers<[1], [0], [0], [1], [0, 0, 1, 1], [], []>} : vector<16x32xbf16>, vector<32x256xbf16>, vector<16x256xf32> -> vector<16x256xf32>
    %cst_52 = arith.constant -1.000000e+00 : f32
    %cst_53 = arith.constant 1.000000e+00 : f32
    %103 = vector.broadcast %cst_52 : f32 to vector<16x256xf32>
    %104 = arith.maximumf %103, %102 : vector<16x256xf32>
    %105 = vector.broadcast %cst_53 : f32 to vector<16x256xf32>
    %106 = arith.minimumf %105, %104 : vector<16x256xf32>
    %c0_54 = arith.constant 0 : index
    %c0_55 = arith.constant 0 : index
    %107 = vector.load %arg12[%c0_54, %c0_55] : memref<16x256xf32, #tpu.memory_space<vmem>>, vector<16x256xf32>
    tpu.vector_store %arg12[%c0_54, %c0_55], %106 {strides = array<i32>} : memref<16x256xf32, #tpu.memory_space<vmem>>, vector<16x256xf32>,
    return
  }
  func.func @transform_0(%arg0: i32) -> (i32, i32) {
    %c0_i32 = arith.constant 0 : i32
    %c0_i32_0 = arith.constant 0 : i32
    return %c0_i32, %arg0 : i32, i32
  }
  func.func @transform_1(%arg0: i32) -> (i32, i32) {
    %c0_i32 = arith.constant 0 : i32
    %c0_i32_0 = arith.constant 0 : i32
    %c0_i32_1 = arith.constant 0 : i32
    return %c0_i32, %c0_i32_0 : i32, i32
  }
  func.func @transform_2(%arg0: i32) -> (i32, i32) {
    %c0_i32 = arith.constant 0 : i32
    %c0_i32_0 = arith.constant 0 : i32
    %c0_i32_1 = arith.constant 0 : i32
    return %c0_i32, %c0_i32_0 : i32, i32
  }
  func.func @transform_3(%arg0: i32) -> (i32, i32) {
    %c0_i32 = arith.constant 0 : i32
    %c0_i32_0 = arith.constant 0 : i32
    %c0_i32_1 = arith.constant 0 : i32
    return %c0_i32, %c0_i32_0 : i32, i32
  }
  func.func @transform_4(%arg0: i32) -> (i32, i32) {
    %c0_i32 = arith.constant 0 : i32
    %c0_i32_0 = arith.constant 0 : i32
    %c0_i32_1 = arith.constant 0 : i32
    return %c0_i32, %c0_i32_0 : i32, i32
  }
  func.func @transform_5(%arg0: i32) -> (i32, i32) {
    %c0_i32 = arith.constant 0 : i32
    %c0_i32_0 = arith.constant 0 : i32
    %c0_i32_1 = arith.constant 0 : i32
    return %c0_i32, %c0_i32_0 : i32, i32
  }
  func.func @transform_6(%arg0: i32) -> (i32, i32) {
    %c0_i32 = arith.constant 0 : i32
    %c0_i32_0 = arith.constant 0 : i32
    %c0_i32_1 = arith.constant 0 : i32
    return %c0_i32, %c0_i32_0 : i32, i32
  }
  func.func @transform_7(%arg0: i32) -> (i32, i32) {
    %c0_i32 = arith.constant 0 : i32
    %c0_i32_0 = arith.constant 0 : i32
    %c0_i32_1 = arith.constant 0 : i32
    return %c0_i32, %c0_i32_0 : i32, i32
  }
  func.func @transform_8(%arg0: i32) -> (i32, i32) {
    %c0_i32 = arith.constant 0 : i32
    %c0_i32_0 = arith.constant 0 : i32
    %c0_i32_1 = arith.constant 0 : i32
    return %c0_i32, %c0_i32_0 : i32, i32
  }
  func.func @transform_9(%arg0: i32) -> (i32, i32) {
    %c0_i32 = arith.constant 0 : i32
    %c0_i32_0 = arith.constant 0 : i32
    %c0_i32_1 = arith.constant 0 : i32
    return %c0_i32, %c0_i32_0 : i32, i32
  }
  func.func @transform_10(%arg0: i32) -> (i32, i32) {
    %c0_i32 = arith.constant 0 : i32
    %c0_i32_0 = arith.constant 0 : i32
    %c0_i32_1 = arith.constant 0 : i32
    return %c0_i32, %c0_i32_0 : i32, i32
  }
  func.func @transform_11(%arg0: i32) -> (i32, i32) {
    %c0_i32 = arith.constant 0 : i32
    %c0_i32_0 = arith.constant 0 : i32
    return %c0_i32, %arg0 : i32, i32
  }
}

</mosaic_0001>

<llo_original>
// kernel: squeeze.81
$region0: #{squeeze.81}
  %s0 = inlined_call_operand.vmem [shape: f32[1,2,169], index: 0, kind: input, shape index: {}]
  %s1 = inlined_call_operand.vmem [shape: f32[2,13,13], index: 1, kind: output, shape index: {}]
  $region1: #{squeeze.81} parent=0
    #allocation0 [shape = 'u8[8192]{0}', space=vmem, size = 0x2000, scoped, tag = 'scoped mem for input reshape']
    %s3 = sshllo.u32 0, 2
    %s4 = scalar_lea.vmem %s0, 2
    %v5 = vld [vmem:[%s4] sm:%s3]
    %s6 = scalar_lea.vmem [#allocation0], 8
    %7 = vst [vmem:[%s6] sm:%s3] %v5
    %v8 = vld [vmem:[%s0] sm:%s3]
    %9 = vst [vmem:[#allocation0] sm:%s3] %v8
    %v10 = vld [vmem:[#allocation0] sm:$0x3]
    %vm11 = vcmask 105472
    %12 = vst.msk [vmem:[%s1] ss:$16 sm:$0x3] %vm11, %v10
    %s13 = scalar_lea.vmem [#allocation0], 8
    %v14 = vld [vmem:[%s13] sm:$0x3]
    %15 = vrot.lane.b32.xlu0 %v14, 126
    %v16 = vpop.permute.xlu0 %15
    %vm17 = vcmask 105472
    %s18 = scalar_lea.vmem %s1, 10
    %19 = vst.msk [vmem:[%s18] ss:$16 sm:$0x3] %vm17, %v16
    %v20 = vld [vmem:[#allocation0] sm:$0x3]
    %21 = vrot.lane.b32.xlu0 %v20, 115
    %v22 = vpop.permute.xlu0 %21
    %vm23 = vcmask 105472
    %s24 = scalar_lea.vmem %s1, 1
    %25 = vst.msk [vmem:[%s24] ss:$16 sm:$0x3] %vm23, %v22
    %s26 = scalar_lea.vmem [#allocation0], 8
    %v27 = vld [vmem:[%s26] sm:$0x3]
    %28 = vrot.lane.b32.xlu0 %v27, 113
    %v29 = vpop.permute.xlu0 %28
    %vm30 = vcmask 105472
    %s31 = scalar_lea.vmem %s1, 11
    %32 = vst.msk [vmem:[%s31] ss:$16 sm:$0x3] %vm30, %v29
    %v33 = vld [vmem:[#allocation0] sm:$0x3]
    %34 = vrot.lane.b32.xlu0 %v33, 102
    %v35 = vpop.permute.xlu0 %34
    %vm36 = vcmask 105472
    %s37 = scalar_lea.vmem %s1, 2
    %38 = vst.msk [vmem:[%s37] ss:$16 sm:$0x3] %vm36, %v35
    %s39 = scalar_lea.vmem [#allocation0], 8
    %v40 = vld [vmem:[%s39] sm:$0x3]
    %41 = vrot.lane.b32.xlu0 %v40, 100
    %v42 = vpop.permute.xlu0 %41
    %vm43 = vcmask 105472
    %s44 = scalar_lea.vmem %s1, 12
    %45 = vst.msk [vmem:[%s44] ss:$16 sm:$0x3] %vm43, %v42
    %v46 = vld [vmem:[#allocation0] sm:$0x3]
    %47 = vrot.lane.b32.xlu0 %v46, 89
    %v48 = vpop.permute.xlu0 %47
    %vm49 = vcmask 105472
    %s50 = scalar_lea.vmem %s1, 3
    %51 = vst.msk [vmem:[%s50] ss:$16 sm:$0x3] %vm49, %v48
    %v52 = vld [vmem:[#allocation0] sm:$0x3]
    %53 = vrot.lane.b32.xlu0 %v52, 76
    %v54 = vpop.permute.xlu0 %53
    %vm55 = vcmask 105472
    %s56 = scalar_lea.vmem %s1, 4
    %57 = vst.msk [vmem:[%s56] ss:$16 sm:$0x3] %vm55, %v54
    %v58 = vld [vmem:[#allocation0] sm:$0x3]
    %59 = vrot.lane.b32.xlu0 %v58, 63
    %v60 = vpop.permute.xlu0 %59
    %vm61 = vcmask 105472
    %s62 = scalar_lea.vmem %s1, 5
    %63 = vst.msk [vmem:[%s62] ss:$16 sm:$0x3] %vm61, %v60
    %v64 = vld [vmem:[#allocation0] sm:$0x3]
    %65 = vrot.lane.b32.xlu0 %v64, 50
    %v66 = vpop.permute.xlu0 %65
    %vm67 = vcmask 105472
    %s68 = scalar_lea.vmem %s1, 6
    %69 = vst.msk [vmem:[%s68] ss:$16 sm:$0x3] %vm67, %v66
    %v70 = vld [vmem:[#allocation0] sm:$0x3]
    %71 = vrot.lane.b32.xlu0 %v70, 37
    %v72 = vpop.permute.xlu0 %71
    %vm73 = vcmask 105472
    %s74 = scalar_lea.vmem %s1, 7
    %75 = vst.msk [vmem:[%s74] ss:$16 sm:$0x3] %vm73, %v72
    %v76 = vld [vmem:[#allocation0] sm:$0x3]
    %77 = vrot.lane.b32.xlu0 %v76, 24
    %v78 = vpop.permute.xlu0 %77
    %vm79 = vcmask 105472
    %s80 = scalar_lea.vmem %s1, 8
    %81 = vst.msk [vmem:[%s80] ss:$16 sm:$0x3] %vm79, %v78
    %v82 = vld [vmem:[#allocation0] sm:$0x3]
    %s83 = scalar_lea.vmem [#allocation0], 8
    %v84 = vld [vmem:[%s83] sm:$0x3]
    %vm85 = vcmask 957440
    %v86 = vsel %vm85, %v84, %v82
    %87 = vrot.lane.b32.xlu0 %v86, 11
    %v88 = vpop.permute.xlu0 %87
    %vm89 = vcmask 89088
    %s90 = scalar_lea.vmem %s1, 9
    %91 = vst.msk [vmem:[%s90] ss:$16 sm:$0x3] %vm89, %v88
    %vm92 = vcmask 105560
    %s93 = scalar_lea.vmem %s1, 9
    %94 = vst.msk [vmem:[%s93] ss:$16 sm:$0x3] %vm92, %v88

// kernel: squeeze.80
$region0: #{squeeze.80}
  %s0 = inlined_call_operand.vmem [shape: f32[338], index: 0, kind: input, shape index: {}]
  %s1 = inlined_call_operand.vmem [shape: f32[2,13,13], index: 1, kind: output, shape index: {}]
  $region1: #{squeeze.80} parent=0
    #allocation0 [shape = 'u8[4096]{0}', space=vmem, size = 0x1000, scoped, tag = 'scoped mem for input reshape']
    %s3 = sshllo.u32 0, 4
    %v4 = vld [vmem:[%s0] sm:%s3]
    %5 = vst [vmem:[#allocation0] sm:%s3] %v4
    %v6 = vld [vmem:[#allocation0] sm:$0x1]
    %vm7 = vcmask 105472
    %8 = vst.msk [vmem:[%s1] sm:$0x1] %vm7, %v6
    %s9 = scalar_lea.vmem [#allocation0], 1
    %v10 = vld [vmem:[%s9] sm:$0x1]
    %11 = vrot.lane.b32.xlu0 %v10, 126
    %v12 = vpop.permute.xlu0 %11
    %vm13 = vcmask 105472
    %s14 = scalar_lea.vmem %s1, 10
    %15 = vst.msk [vmem:[%s14] sm:$0x1] %vm13, %v12
    %s16 = scalar_lea.vmem [#allocation0], 2
    %v17 = vld [vmem:[%s16] sm:$0x1]
    %18 = vrot.lane.b32.xlu0 %v17, 124
    %v19 = vpop.permute.xlu0 %18
    %vm20 = vcmask 105472
    %s21 = scalar_lea.vmem %s1, 23
    %22 = vst.msk [vmem:[%s21] sm:$0x1] %vm20, %v19
    %v23 = vld [vmem:[#allocation0] sm:$0x1]
    %24 = vrot.lane.b32.xlu0 %v23, 115
    %v25 = vpop.permute.xlu0 %24
    %vm26 = vcmask 105472
    %s27 = scalar_lea.vmem %s1, 1
    %28 = vst.msk [vmem:[%s27] sm:$0x1] %vm26, %v25
    %s29 = scalar_lea.vmem [#allocation0], 1
    %v30 = vld [vmem:[%s29] sm:$0x1]
    %31 = vrot.lane.b32.xlu0 %v30, 113
    %v32 = vpop.permute.xlu0 %31
    %vm33 = vcmask 105472
    %s34 = scalar_lea.vmem %s1, 11
    %35 = vst.msk [vmem:[%s34] sm:$0x1] %vm33, %v32
    %s36 = scalar_lea.vmem [#allocation0], 2
    %v37 = vld [vmem:[%s36] sm:$0x1]
    %38 = vrot.lane.b32.xlu0 %v37, 111
    %v39 = vpop.permute.xlu0 %38
    %vm40 = vcmask 105472
    %s41 = scalar_lea.vmem %s1, 24
    %42 = vst.msk [vmem:[%s41] sm:$0x1] %vm40, %v39
    %v43 = vld [vmem:[#allocation0] sm:$0x1]
    %44 = vrot.lane.b32.xlu0 %v43, 102
    %v45 = vpop.permute.xlu0 %44
    %vm46 = vcmask 105472
    %s47 = scalar_lea.vmem %s1, 2
    %48 = vst.msk [vmem:[%s47] sm:$0x1] %vm46, %v45
    %s49 = scalar_lea.vmem [#allocation0], 1
    %v50 = vld [vmem:[%s49] sm:$0x1]
    %51 = vrot.lane.b32.xlu0 %v50, 100
    %v52 = vpop.permute.xlu0 %51
    %vm53 = vcmask 105472
    %s54 = scalar_lea.vmem %s1, 12
    %55 = vst.msk [vmem:[%s54] sm:$0x1] %vm53, %v52
    %s56 = scalar_lea.vmem [#allocation0], 2
    %v57 = vld [vmem:[%s56] sm:$0x1]
    %58 = vrot.lane.b32.xlu0 %v57, 98
    %v59 = vpop.permute.xlu0 %58
    %vm60 = vcmask 105472
    %s61 = scalar_lea.vmem %s1, 25
    %62 = vst.msk [vmem:[%s61] sm:$0x1] %vm60, %v59
    %v63 = vld [vmem:[#allocation0] sm:$0x1]
    %64 = vrot.lane.b32.xlu0 %v63, 89
    %v65 = vpop.permute.xlu0 %64
    %vm66 = vcmask 105472
    %s67 = scalar_lea.vmem %s1, 3
    %68 = vst.msk [vmem:[%s67] sm:$0x1] %vm66, %v65
    %s69 = scalar_lea.vmem [#allocation0], 1
    %v70 = vld [vmem:[%s69] sm:$0x1]
    %71 = vrot.lane.b32.xlu0 %v70, 87
    %v72 = vpop.permute.xlu0 %71
    %vm73 = vcmask 105472
    %s74 = scalar_lea.vmem %s1, 16
    %75 = vst.msk [vmem:[%s74] sm:$0x1] %vm73, %v72
    %s76 = scalar_lea.vmem [#allocation0], 2
    %v77 = vld [vmem:[%s76] sm:$0x1]
    %78 = vrot.lane.b32.xlu0 %v77, 85
    %v79 = vpop.permute.xlu0 %78
    %vm80 = vcmask 105472
    %s81 = scalar_lea.vmem %s1, 26
    %82 = vst.msk [vmem:[%s81] sm:$0x1] %vm80, %v79
    %v83 = vld [vmem:[#allocation0] sm:$0x1]
    %84 = vrot.lane.b32.xlu0 %v83, 76
    %v85 = vpop.permute.xlu0 %84
    %vm86 = vcmask 105472
    %s87 = scalar_lea.vmem %s1, 4
    %88 = vst.msk [vmem:[%s87] sm:$0x1] %vm86, %v85
    %s89 = scalar_lea.vmem [#allocation0], 1
    %v90 = vld [vmem:[%s89] sm:$0x1]
    %91 = vrot.lane.b32.xlu0 %v90, 74
    %v92 = vpop.permute.xlu0 %91
    %vm93 = vcmask 105472
    %s94 = scalar_lea.vmem %s1, 17
    %95 = vst.msk [vmem:[%s94] sm:$0x1] %vm93, %v92
    %s96 = scalar_lea.vmem [#allocation0], 2
    %v97 = vld [vmem:[%s96] sm:$0x1]
    %98 = vrot.lane.b32.xlu0 %v97, 72
    %v99 = vpop.permute.xlu0 %98
    %vm100 = vcmask 105472
    %s101 = scalar_lea.vmem %s1, 27
    %102 = vst.msk [vmem:[%s101] sm:$0x1] %vm100, %v99
    %v103 = vld [vmem:[#allocation0] sm:$0x1]
    %104 = vrot.lane.b32.xlu0 %v103, 63
    %v105 = vpop.permute.xlu0 %104
    %vm106 = vcmask 105472
    %s107 = scalar_lea.vmem %s1, 5
    %108 = vst.msk [vmem:[%s107] sm:$0x1] %vm106, %v105
    %s109 = scalar_lea.vmem [#allocation0], 1
    %v110 = vld [vmem:[%s109] sm:$0x1]
    %111 = vrot.lane.b32.xlu0 %v110, 61
    %v112 = vpop.permute.xlu0 %111
    %vm113 = vcmask 105472
    %s114 = scalar_lea.vmem %s1, 18
    %115 = vst.msk [vmem:[%s114] sm:$0x1] %vm113, %v112
    %s116 = scalar_lea.vmem [#allocation0], 2
    %v117 = vld [vmem:[%s116] sm:$0x1]
    %118 = vrot.lane.b32.xlu0 %v117, 59
    %v119 = vpop.permute.xlu0 %118
    %vm120 = vcmask 105472
    %s121 = scalar_lea.vmem %s1, 28
    %122 = vst.msk [vmem:[%s121] sm:$0x1] %vm120, %v119
    %v123 = vld [vmem:[#allocation0] sm:$0x1]
    %124 = vrot.lane.b32.xlu0 %v123, 50
    %v125 = vpop.permute.xlu0 %124
    %vm126 = vcmask 105472
    %s127 = scalar_lea.vmem %s1, 6
    %128 = vst.msk [vmem:[%s127] sm:$0x1] %vm126, %v125
    %s129 = scalar_lea.vmem [#allocation0], 1
    %v130 = vld [vmem:[%s129] sm:$0x1]
    %131 = vrot.lane.b32.xlu0 %v130, 48
    %v132 = vpop.permute.xlu0 %131
    %vm133 = vcmask 105472
    %s134 = scalar_lea.vmem %s1, 19
    %135 = vst.msk [vmem:[%s134] sm:$0x1] %vm133, %v132
    %v136 = vld [vmem:[#allocation0] sm:$0x1]
    %137 = vrot.lane.b32.xlu0 %v136, 37
    %v138 = vpop.permute.xlu0 %137
    %vm139 = vcmask 105472
    %s140 = scalar_lea.vmem %s1, 7
    %141 = vst.msk [vmem:[%s140] sm:$0x1] %vm139, %v138
    %s142 = scalar_lea.vmem [#allocation0], 1
    %v143 = vld [vmem:[%s142] sm:$0x1]
    %144 = vrot.lane.b32.xlu0 %v143, 35
    %v145 = vpop.permute.xlu0 %144
    %vm146 = vcmask 105472
    %s147 = scalar_lea.vmem %s1, 20
    %148 = vst.msk [vmem:[%s147] sm:$0x1] %vm146, %v145
    %v149 = vld [vmem:[#allocation0] sm:$0x1]
    %150 = vrot.lane.b32.xlu0 %v149, 24
    %v151 = vpop.permute.xlu0 %150
    %vm152 = vcmask 105472
    %s153 = scalar_lea.vmem %s1, 8
    %154 = vst.msk [vmem:[%s153] sm:$0x1] %vm152, %v151
    %s155 = scalar_lea.vmem [#allocation0], 1
    %v156 = vld [vmem:[%s155] sm:$0x1]
    %157 = vrot.lane.b32.xlu0 %v156, 22
    %v158 = vpop.permute.xlu0 %157
    %vm159 = vcmask 105472
    %s160 = scalar_lea.vmem %s1, 21
    %161 = vst.msk [vmem:[%s160] sm:$0x1] %vm159, %v158
    %v162 = vld [vmem:[#allocation0] sm:$0x1]
    %s163 = scalar_lea.vmem [#allocation0], 1
    %v164 = vld [vmem:[%s163] sm:$0x1]
    %vm165 = vcmask 957440
    %v166 = vsel %vm165, %v164, %v162
    %167 = vrot.lane.b32.xlu0 %v166, 11
    %v168 = vpop.permute.xlu0 %167
    %vm169 = vcmask 89088
    %s170 = scalar_lea.vmem %s1, 9
    %171 = vst.msk [vmem:[%s170] sm:$0x1] %vm169, %v168
    %vm172 = vcmask 105560
    %s173 = scalar_lea.vmem %s1, 9
    %174 = vst.msk [vmem:[%s173] sm:$0x1] %vm172, %v168
    %s175 = scalar_lea.vmem [#allocation0], 1
    %v176 = vld [vmem:[%s175] sm:$0x1]
    %s177 = scalar_lea.vmem [#allocation0], 2
    %v178 = vld [vmem:[%s177] sm:$0x1]
    %vm179 = vcmask 973824
    %v180 = vsel %vm179, %v178, %v176
    %181 = vrot.lane.b32.xlu0 %v180, 9
    %v182 = vpop.permute.xlu0 %181
    %vm183 = vcmask 72704
    %s184 = scalar_lea.vmem %s1, 22
    %185 = vst.msk [vmem:[%s184] sm:$0x1] %vm183, %v182
    %vm186 = vcmask 105544
    %s187 = scalar_lea.vmem %s1, 22
    %188 = vst.msk [vmem:[%s187] sm:$0x1] %vm186, %v182

// kernel: _lambda_.2
$region0: #{_lambda_.2}
  #allocation0 [shape = 'u32[]', space=smem, size = 0x4, offset = 0x4, fixed_abs, tag = 'smem constant byte address 0x4 - core index']
  #allocation1 [shape = 'u32[144,128]{1,0:T(1,128)}', space=vmem, size = 0x12000, scoped, tag = 'internal scratch']
  #allocation2 [shape = 'f32[1,1]{1,0:T(1,128)S(1)}', space=vmem, size = 0x200, scoped, tag = 'scoped memory for _lambda_.2']
  %s0 = inlined_call_operand.vmem [shape: bf16[16,512], index: 0, kind: input, shape index: {}]
  %s1 = inlined_call_operand.vmem [shape: bf16[64,16], index: 1, kind: input, shape index: {}]
  %s2 = inlined_call_operand.vmem [shape: f32[32,1], index: 2, kind: input, shape index: {}]
  %s3 = inlined_call_operand.vmem [shape: bf16[32,32], index: 3, kind: input, shape index: {}]
  %s4 = inlined_call_operand.vmem [shape: f32[32,1], index: 4, kind: input, shape index: {}]
  %s5 = inlined_call_operand.vmem [shape: bf16[16,32], index: 5, kind: input, shape index: {}]
  %s6 = inlined_call_operand.vmem [shape: f32[16,1], index: 6, kind: input, shape index: {}]
  %s7 = inlined_call_operand.vmem [shape: f32[16,1], index: 7, kind: input, shape index: {}]
  %s8 = inlined_call_operand.<no memory space> [shape: f32[1,1], index: 8, kind: input, shape index: {}]
  %s9 = inlined_call_operand.vmem [shape: bf16[32,32], index: 9, kind: input, shape index: {}]
  %s10 = inlined_call_operand.vmem [shape: bf16[16,32], index: 10, kind: input, shape index: {}]
  %s11 = inlined_call_operand.vmem [shape: f32[16,512], index: 11, kind: output, shape index: {}]
  %s12 = sld [smem:[#allocation0]]
  $region134: #{_lambda_.2} parent=0
    _
  %s14 = ssub.s32 1, %s12
  %s15 = scalar_select 0, %s14, %s12
  %v16 = vstv %s8
  %17 = vst [vmem:[#allocation2] sm:$0x1] %v16
  $region1: #{_lambda_.2} parent=0
    #allocation3 [shape = 'u8[16384]{0}', space=vmem, size = 0x4000, scoped, tag = 'input window, operand 0']
    #allocation4 [shape = 'u8[32768]{0}', space=vmem, size = 0x8000, scoped, tag = 'output window, operand 0']
    loop: start=0, step=1, limit=4
    $region2: #{_lambda_.2} parent=1 // loop_pre_header
      _
    $region3: #{_lambda_.2} parent=1 // loop_header
      %s19 = sphi 0, %s23
      %p20 = scmp.ge.s32.totalorder %s19, 4
      %s29 = sphi 0, %s31
      %s32 = sphi 0, %s29
      %s33 = sphi 0, %s32
      %s49 = sphi 0, %s33
      %s53 = sphi 0, %s53
      %s55 = sphi 0, %s53
      %s56 = sphi 0, %s55
      %s70 = sphi 0, %s56
      %s74 = sphi 0, %s74
      %s76 = sphi 0, %s74
      %s77 = sphi 0, %s76
      %s91 = sphi 0, %s77
      %s95 = sphi 0, %s95
      %s97 = sphi 0, %s95
      %s98 = sphi 0, %s97
      %s112 = sphi 0, %s98
      %s116 = sphi 0, %s116
      %s118 = sphi 0, %s116
      %s119 = sphi 0, %s118
      %s133 = sphi 0, %s119
      %s137 = sphi 0, %s137
      %s139 = sphi 0, %s137
      %s140 = sphi 0, %s139
      %s154 = sphi 0, %s140
      %s158 = sphi 0, %s158
      %s160 = sphi 0, %s158
      %s161 = sphi 0, %s160
      %s175 = sphi 0, %s161
      %s179 = sphi 0, %s179
      %s181 = sphi 0, %s179
      %s182 = sphi 0, %s181
      %s196 = sphi 0, %s182
      %s200 = sphi 0, %s200
      %s202 = sphi 0, %s200
      %s203 = sphi 0, %s202
      %s217 = sphi 0, %s203
      %s221 = sphi 0, %s221
      %s223 = sphi 0, %s221
      %s224 = sphi 0, %s223
      %s238 = sphi 0, %s224
      %s242 = sphi 0, %s242
      %s244 = sphi 0, %s242
      %s245 = sphi 0, %s244
      %s259 = sphi 0, %s245
      %s265 = sphi 0, %s267
      %s268 = sphi 0, %s265
      %s269 = sphi 0, %s268
      %s285 = sphi 0, %s269
    $region4: #{_lambda_.2} parent=1 // loop_header_branch
      %22 = sbr.rel (%p20) target = $region8
    $region5: #{_lambda_.2} parent=1 // loop_body
      %s24 = ssub.s32 %s19, 1
      %s25 = ssub.s32 %s19, 2
      %s26 = sadd.s32 %s19, 1
      %s27 = ssub.s32 %s19, %s26
      %p28 = scmp.eq.s32.totalorder %s27, 0
      %s30 = sadd.s32 %s29, 1
      %s31 = scalar_select %p28, %s29, %s30
      %p34 = pneg %p28
      %p35 = scmp.eq.s32.totalorder %s19, 1
      %p36 = por %p34, %p35
      %p37 = scmp.ne.s32.totalorder %s29, %s32
      %p38 = scmp.eq.s32.totalorder %s19, 0
      %p39 = por %p37, %p38
      %p40 = scmp.ne.s32.totalorder %s29, %s32
      %p41 = scmp.eq.s32.totalorder %s24, 1
      %p42 = por %p40, %p41
      %p43 = scmp.ne.s32.totalorder %s32, %s33
      %p44 = scmp.eq.s32.totalorder %s24, 0
      %p45 = por %p43, %p44
      %p46 = scmp.ne.s32.totalorder %s32, %s33
      %p47 = scmp.eq.s32.totalorder %s25, 1
      %p48 = por %p46, %p47
      %p50 = scmp.ne.s32.totalorder %s33, %s49
      %p51 = scmp.eq.s32.totalorder %s25, 0
      %p52 = por %p50, %p51
      %s54 = sadd.s32 %s53, 1
      %p57 = scmp.eq.s32.totalorder %s19, 1
      %p58 = scmp.ne.s32.totalorder %s53, %s55
      %p59 = scmp.eq.s32.totalorder %s19, 0
      %p60 = por %p58, %p59
      %p61 = scmp.ne.s32.totalorder %s53, %s55
      %p62 = scmp.eq.s32.totalorder %s24, 1
      %p63 = por %p61, %p62
      %p64 = scmp.ne.s32.totalorder %s55, %s56
      %p65 = scmp.eq.s32.totalorder %s24, 0
      %p66 = por %p64, %p65
      %p67 = scmp.ne.s32.totalorder %s55, %s56
      %p68 = scmp.eq.s32.totalorder %s25, 1
      %p69 = por %p67, %p68
      %p71 = scmp.ne.s32.totalorder %s56, %s70
      %p72 = scmp.eq.s32.totalorder %s25, 0
      %p73 = por %p71, %p72
      %s75 = sadd.s32 %s74, 1
      %p78 = scmp.eq.s32.totalorder %s19, 1
      %p79 = scmp.ne.s32.totalorder %s74, %s76
      %p80 = scmp.eq.s32.totalorder %s19, 0
      %p81 = por %p79, %p80
      %p82 = scmp.ne.s32.totalorder %s74, %s76
      %p83 = scmp.eq.s32.totalorder %s24, 1
      %p84 = por %p82, %p83
      %p85 = scmp.ne.s32.totalorder %s76, %s77
      %p86 = scmp.eq.s32.totalorder %s24, 0
      %p87 = por %p85, %p86
      %p88 = scmp.ne.s32.totalorder %s76, %s77
      %p89 = scmp.eq.s32.totalorder %s25, 1
      %p90 = por %p88, %p89
      %p92 = scmp.ne.s32.totalorder %s77, %s91
      %p93 = scmp.eq.s32.totalorder %s25, 0
      %p94 = por %p92, %p93
      %s96 = sadd.s32 %s95, 1
      %p99 = scmp.eq.s32.totalorder %s19, 1
      %p100 = scmp.ne.s32.totalorder %s95, %s97
      %p101 = scmp.eq.s32.totalorder %s19, 0
      %p102 = por %p100, %p101
      %p103 = scmp.ne.s32.totalorder %s95, %s97
      %p104 = scmp.eq.s32.totalorder %s24, 1
      %p105 = por %p103, %p104
      %p106 = scmp.ne.s32.totalorder %s97, %s98
      %p107 = scmp.eq.s32.totalorder %s24, 0
      %p108 = por %p106, %p107
      %p109 = scmp.ne.s32.totalorder %s97, %s98
      %p110 = scmp.eq.s32.totalorder %s25, 1
      %p111 = por %p109, %p110
      %p113 = scmp.ne.s32.totalorder %s98, %s112
      %p114 = scmp.eq.s32.totalorder %s25, 0
      %p115 = por %p113, %p114
      %s117 = sadd.s32 %s116, 1
      %p120 = scmp.eq.s32.totalorder %s19, 1
      %p121 = scmp.ne.s32.totalorder %s116, %s118
      %p122 = scmp.eq.s32.totalorder %s19, 0
      %p123 = por %p121, %p122
      %p124 = scmp.ne.s32.totalorder %s116, %s118
      %p125 = scmp.eq.s32.totalorder %s24, 1
      %p126 = por %p124, %p125
      %p127 = scmp.ne.s32.totalorder %s118, %s119
      %p128 = scmp.eq.s32.totalorder %s24, 0
      %p129 = por %p127, %p128
      %p130 = scmp.ne.s32.totalorder %s118, %s119
      %p131 = scmp.eq.s32.totalorder %s25, 1
      %p132 = por %p130, %p131
      %p134 = scmp.ne.s32.totalorder %s119, %s133
      %p135 = scmp.eq.s32.totalorder %s25, 0
      %p136 = por %p134, %p135
      %s138 = sadd.s32 %s137, 1
      %p141 = scmp.eq.s32.totalorder %s19, 1
      %p142 = scmp.ne.s32.totalorder %s137, %s139
      %p143 = scmp.eq.s32.totalorder %s19, 0
      %p144 = por %p142, %p143
      %p145 = scmp.ne.s32.totalorder %s137, %s139
      %p146 = scmp.eq.s32.totalorder %s24, 1
      %p147 = por %p145, %p146
      %p148 = scmp.ne.s32.totalorder %s139, %s140
      %p149 = scmp.eq.s32.totalorder %s24, 0
      %p150 = por %p148, %p149
      %p151 = scmp.ne.s32.totalorder %s139, %s140
      %p152 = scmp.eq.s32.totalorder %s25, 1
      %p153 = por %p151, %p152
      %p155 = scmp.ne.s32.totalorder %s140, %s154
      %p156 = scmp.eq.s32.totalorder %s25, 0
      %p157 = por %p155, %p156
      %s159 = sadd.s32 %s158, 1
      %p162 = scmp.eq.s32.totalorder %s19, 1
      %p163 = scmp.ne.s32.totalorder %s158, %s160
      %p164 = scmp.eq.s32.totalorder %s19, 0
      %p165 = por %p163, %p164
      %p166 = scmp.ne.s32.totalorder %s158, %s160
      %p167 = scmp.eq.s32.totalorder %s24, 1
      %p168 = por %p166, %p167
      %p169 = scmp.ne.s32.totalorder %s160, %s161
      %p170 = scmp.eq.s32.totalorder %s24, 0
      %p171 = por %p169, %p170
      %p172 = scmp.ne.s32.totalorder %s160, %s161
      %p173 = scmp.eq.s32.totalorder %s25, 1
      %p174 = por %p172, %p173
      %p176 = scmp.ne.s32.totalorder %s161, %s175
      %p177 = scmp.eq.s32.totalorder %s25, 0
      %p178 = por %p176, %p177
      %s180 = sadd.s32 %s179, 1
      %p183 = scmp.eq.s32.totalorder %s19, 1
      %p184 = scmp.ne.s32.totalorder %s179, %s181
      %p185 = scmp.eq.s32.totalorder %s19, 0
      %p186 = por %p184, %p185
      %p187 = scmp.ne.s32.totalorder %s179, %s181
      %p188 = scmp.eq.s32.totalorder %s24, 1
      %p189 = por %p187, %p188
      %p190 = scmp.ne.s32.totalorder %s181, %s182
      %p191 = scmp.eq.s32.totalorder %s24, 0
      %p192 = por %p190, %p191
      %p193 = scmp.ne.s32.totalorder %s181, %s182
      %p194 = scmp.eq.s32.totalorder %s25, 1
      %p195 = por %p193, %p194
      %p197 = scmp.ne.s32.totalorder %s182, %s196
      %p198 = scmp.eq.s32.totalorder %s25, 0
      %p199 = por %p197, %p198
      %s201 = sadd.s32 %s200, 1
      %p204 = scmp.eq.s32.totalorder %s19, 1
      %p205 = scmp.ne.s32.totalorder %s200, %s202
      %p206 = scmp.eq.s32.totalorder %s19, 0
      %p207 = por %p205, %p206
      %p208 = scmp.ne.s32.totalorder %s200, %s202
      %p209 = scmp.eq.s32.totalorder %s24, 1
      %p210 = por %p208, %p209
      %p211 = scmp.ne.s32.totalorder %s202, %s203
      %p212 = scmp.eq.s32.totalorder %s24, 0
      %p213 = por %p211, %p212
      %p214 = scmp.ne.s32.totalorder %s202, %s203
      %p215 = scmp.eq.s32.totalorder %s25, 1
      %p216 = por %p214, %p215
      %p218 = scmp.ne.s32.totalorder %s203, %s217
      %p219 = scmp.eq.s32.totalorder %s25, 0
      %p220 = por %p218, %p219
      %s222 = sadd.s32 %s221, 1
      %p225 = scmp.eq.s32.totalorder %s19, 1
      %p226 = scmp.ne.s32.totalorder %s221, %s223
      %p227 = scmp.eq.s32.totalorder %s19, 0
      %p228 = por %p226, %p227
      %p229 = scmp.ne.s32.totalorder %s221, %s223
      %p230 = scmp.eq.s32.totalorder %s24, 1
      %p231 = por %p229, %p230
      %p232 = scmp.ne.s32.totalorder %s223, %s224
      %p233 = scmp.eq.s32.totalorder %s24, 0
      %p234 = por %p232, %p233
      %p235 = scmp.ne.s32.totalorder %s223, %s224
      %p236 = scmp.eq.s32.totalorder %s25, 1
      %p237 = por %p235, %p236
      %p239 = scmp.ne.s32.totalorder %s224, %s238
      %p240 = scmp.eq.s32.totalorder %s25, 0
      %p241 = por %p239, %p240
      %s243 = sadd.s32 %s242, 1
      %p246 = scmp.eq.s32.totalorder %s19, 1
      %p247 = scmp.ne.s32.totalorder %s242, %s244
      %p248 = scmp.eq.s32.totalorder %s19, 0
      %p249 = por %p247, %p248
      %p250 = scmp.ne.s32.totalorder %s242, %s244
      %p251 = scmp.eq.s32.totalorder %s24, 1
      %p252 = por %p250, %p251
      %p253 = scmp.ne.s32.totalorder %s244, %s245
      %p254 = scmp.eq.s32.totalorder %s24, 0
      %p255 = por %p253, %p254
      %p256 = scmp.ne.s32.totalorder %s244, %s245
      %p257 = scmp.eq.s32.totalorder %s25, 1
      %p258 = por %p256, %p257
      %p260 = scmp.ne.s32.totalorder %s245, %s259
      %p261 = scmp.eq.s32.totalorder %s25, 0
      %p262 = por %p260, %p261
      %s263 = ssub.s32 %s19, %s26
      %p264 = scmp.eq.s32.totalorder %s263, 0
      %s266 = sadd.s32 %s265, 1
      %s267 = scalar_select %p264, %s265, %s266
      %p270 = pneg %p264
      %p271 = scmp.eq.s32.totalorder %s19, 1
      %p272 = por %p270, %p271
      %p273 = scmp.ne.s32.totalorder %s265, %s268
      %p274 = scmp.eq.s32.totalorder %s19, 0
      %p275 = por %p273, %p274
      %p276 = scmp.ne.s32.totalorder %s265, %s268
      %p277 = scmp.eq.s32.totalorder %s24, 1
      %p278 = por %p276, %p277
      %p279 = scmp.ne.s32.totalorder %s268, %s269
      %p280 = scmp.eq.s32.totalorder %s24, 0
      %p281 = por %p279, %p280
      %p282 = scmp.ne.s32.totalorder %s268, %s269
      %p283 = scmp.eq.s32.totalorder %s25, 1
      %p284 = por %p282, %p283
      %p286 = scmp.ne.s32.totalorder %s269, %s285
      %p287 = scmp.eq.s32.totalorder %s25, 0
      %p288 = por %p286, %p287
      %p289 = scmp.le.s32.totalorder 1, %s19
      %p290 = scmp.lt.s32.totalorder %s19, 3
      %p291 = pnand %p289, %p290
      %p292 = pneg %p291
      // Predicated region
      $region9: #{_lambda_.2} parent=5 // pred_check
        _
      $region10: #{_lambda_.2} parent=5 // pred_check_branch
        %294 = sbr.rel (%p291) target = $region12
      $region11: #{_lambda_.2} parent=5 // pred_region
        %s295 = ssub.s32 %s19, 1
        // Predicated region
        $region13: #{_lambda_.2} parent=11 // pred_check
          %p296 = pneg %p66
        $region14: #{_lambda_.2} parent=11 // pred_check_branch
          %298 = sbr.rel (%p296) target = $region16
        $region15: #{_lambda_.2} parent=11 // pred_region
          _
        $region16: #{_lambda_.2} parent=11 // pred_fallthru
          _
        // Predicated region
        $region17: #{_lambda_.2} parent=11 // pred_check
          %p299 = pneg %p87
        $region18: #{_lambda_.2} parent=11 // pred_check_branch
          %301 = sbr.rel (%p299) target = $region20
        $region19: #{_lambda_.2} parent=11 // pred_region
          _
        $region20: #{_lambda_.2} parent=11 // pred_fallthru
          _
        // Predicated region
        $region21: #{_lambda_.2} parent=11 // pred_check
          %p302 = pneg %p108
        $region22: #{_lambda_.2} parent=11 // pred_check_branch
          %304 = sbr.rel (%p302) target = $region24
        $region23: #{_lambda_.2} parent=11 // pred_region
          _
        $region24: #{_lambda_.2} parent=11 // pred_fallthru
          _
        // Predicated region
        $region25: #{_lambda_.2} parent=11 // pred_check
          %p305 = pneg %p129
        $region26: #{_lambda_.2} parent=11 // pred_check_branch
          %307 = sbr.rel (%p305) target = $region28
        $region27: #{_lambda_.2} parent=11 // pred_region
          _
        $region28: #{_lambda_.2} parent=11 // pred_fallthru
          _
        // Predicated region
        $region29: #{_lambda_.2} parent=11 // pred_check
          %p308 = pneg %p150
        $region30: #{_lambda_.2} parent=11 // pred_check_branch
          %310 = sbr.rel (%p308) target = $region32
        $region31: #{_lambda_.2} parent=11 // pred_region
          _
        $region32: #{_lambda_.2} parent=11 // pred_fallthru
          _
        // Predicated region
        $region33: #{_lambda_.2} parent=11 // pred_check
          %p311 = pneg %p171
        $region34: #{_lambda_.2} parent=11 // pred_check_branch
          %313 = sbr.rel (%p311) target = $region36
        $region35: #{_lambda_.2} parent=11 // pred_region
          _
        $region36: #{_lambda_.2} parent=11 // pred_fallthru
          _
        // Predicated region
        $region37: #{_lambda_.2} parent=11 // pred_check
          %p314 = pneg %p192
        $region38: #{_lambda_.2} parent=11 // pred_check_branch
          %316 = sbr.rel (%p314) target = $region40
        $region39: #{_lambda_.2} parent=11 // pred_region
          _
        $region40: #{_lambda_.2} parent=11 // pred_fallthru
          _
        // Predicated region
        $region41: #{_lambda_.2} parent=11 // pred_check
          %p317 = pneg %p213
        $region42: #{_lambda_.2} parent=11 // pred_check_branch
          %319 = sbr.rel (%p317) target = $region44
        $region43: #{_lambda_.2} parent=11 // pred_region
          _
        $region44: #{_lambda_.2} parent=11 // pred_fallthru
          _
        // Predicated region
        $region45: #{_lambda_.2} parent=11 // pred_check
          %p320 = pneg %p234
        $region46: #{_lambda_.2} parent=11 // pred_check_branch
          %322 = sbr.rel (%p320) target = $region48
        $region47: #{_lambda_.2} parent=11 // pred_region
          _
        $region48: #{_lambda_.2} parent=11 // pred_fallthru
          _
        // Predicated region
        $region49: #{_lambda_.2} parent=11 // pred_check
          %p323 = pneg %p255
        $region50: #{_lambda_.2} parent=11 // pred_check_branch
          %325 = sbr.rel (%p323) target = $region52
        $region51: #{_lambda_.2} parent=11 // pred_region
          _
        $region52: #{_lambda_.2} parent=11 // pred_fallthru
          _
      $region12: #{_lambda_.2} parent=5 // pred_fallthru
        _
      %p326 = scmp.lt.s32.totalorder %s19, 2
      // Predicated region
      $region53: #{_lambda_.2} parent=5 // pred_check
        %p327 = pneg %p326
      $region54: #{_lambda_.2} parent=5 // pred_check_branch
        %329 = sbr.rel (%p327) target = $region56
      $region55: #{_lambda_.2} parent=5 // pred_region
        // Predicated region
        $region57: #{_lambda_.2} parent=55 // pred_check
          %p330 = pneg %p39
        $region58: #{_lambda_.2} parent=55 // pred_check_branch
          %332 = sbr.rel (%p330) target = $region60
        $region59: #{_lambda_.2} parent=55 // pred_region
          %s333 = sand.u32 %s29, 1
          %s334 = sand.u32 %s29, 1
          %s335 = smul.addr %s334, 16
          %s336 = scalar_lea.vmem [#allocation3], %s335
          %s337 = smul.u32 2, %s19
          %s338 = smul.addr %s337, 4
          %s339 = scalar_lea.vmem %s0, %s338
          // Predicated region
          $region61: #{_lambda_.2} parent=59 // pred_check
            _
          $region62: #{_lambda_.2} parent=59 // pred_check_branch
            %341 = sbr.rel (0) target = $region64
          $region63: #{_lambda_.2} parent=59 // pred_region
            // Predicated region
            $region65: #{_lambda_.2} parent=63 // pred_check
              _
            $region66: #{_lambda_.2} parent=63 // pred_check_branch
              %343 = sbr.rel (0) target = $region68
            $region67: #{_lambda_.2} parent=63 // pred_region
              // Predicated region
              $region80: #{_lambda_.2} parent=67 // pred_check
                _
              $region81: #{_lambda_.2} parent=67 // pred_check_branch
                %360 = sbr.rel (0) target = $region83
              $region82: #{_lambda_.2} parent=67 // pred_region
                loop: start=0, step=1, limit=1
                $region84: #{_lambda_.2} parent=82 // loop_pre_header
                  _
                $region85: #{_lambda_.2} parent=82 // loop_header
                  %s362 = sphi 0, %s366
                  %p363 = scmp.ge.s32.totalorder %s362, 1
                  %s367 = sphi %s339, %s339
                  %s368 = sphi %s336, %s336
                $region86: #{_lambda_.2} parent=82 // loop_header_branch
                  %365 = sbr.rel (%p363) target = $region90
                $region87: #{_lambda_.2} parent=82 // loop_body
                  %v369 = vld [vmem:[%s367] sm:$0xff]
                  %370 = vst [vmem:[%s368] sm:$0xff] %v369
                  %v371 = vld [vmem:[%s367 + $0x10] sm:$0xff]
                  %372 = vst [vmem:[%s368 + $0x8] sm:$0xff] %v371
                $region88: #{_lambda_.2} parent=82 // loop_footer
                  %s366 = sadd.s32 1, %s362
                $region89: #{_lambda_.2} parent=82 // loop_footer_branch
                  %361 = sbr.rel target = $region85
                $region90: #{_lambda_.2} parent=82 // loop_exit
                  _
              $region83: #{_lambda_.2} parent=67 // pred_fallthru
                _
              // Predicated region
              $region91: #{_lambda_.2} parent=67 // pred_check
                _
              $region92: #{_lambda_.2} parent=67 // pred_check_branch
                %374 = sbr.rel target = $region94
              $region93: #{_lambda_.2} parent=67 // pred_region
                _
              $region94: #{_lambda_.2} parent=67 // pred_fallthru
                _
            $region68: #{_lambda_.2} parent=63 // pred_fallthru
              _
            // Predicated region
            $region69: #{_lambda_.2} parent=63 // pred_check
              _
            $region70: #{_lambda_.2} parent=63 // pred_check_branch
              %345 = sbr.rel target = $region72
            $region71: #{_lambda_.2} parent=63 // pred_region
              loop: start=0, step=1, limit=1
              $region73: #{_lambda_.2} parent=71 // loop_pre_header
                _
              $region74: #{_lambda_.2} parent=71 // loop_header
                %s348 = sphi 0, %s352
                %p349 = scmp.ge.s32.totalorder %s348, 1
                %s353 = sphi %s339, %s339
                %s354 = sphi %s336, %s336
              $region75: #{_lambda_.2} parent=71 // loop_header_branch
                %351 = sbr.rel (%p349) target = $region79
              $region76: #{_lambda_.2} parent=71 // loop_body
                %v355 = vld [vmem:[%s353] sm:$0xff]
                %356 = vst [vmem:[%s354] sm:$0xff] %v355
                %v357 = vld [vmem:[%s353 + $0x10] sm:$0xff]
                %358 = vst [vmem:[%s354 + $0x8] sm:$0xff] %v357
              $region77: #{_lambda_.2} parent=71 // loop_footer
                %s352 = sadd.s32 1, %s348
              $region78: #{_lambda_.2} parent=71 // loop_footer_branch
                %347 = sbr.rel target = $region74
              $region79: #{_lambda_.2} parent=71 // loop_exit
                _
            $region72: #{_lambda_.2} parent=63 // pred_fallthru
              _
          $region64: #{_lambda_.2} parent=59 // pred_fallthru
            _
          %375 = vnop
        $region60: #{_lambda_.2} parent=55 // pred_fallthru
          _
      $region56: #{_lambda_.2} parent=5 // pred_fallthru
        _
      %p376 = scmp.le.s32.totalorder 1, %s19
      %p377 = scmp.lt.s32.totalorder %s19, 3
      %p378 = pnand %p376, %p377
      %p379 = pneg %p378
      // Predicated region
      $region95: #{_lambda_.2} parent=5 // pred_check
        _
      $region96: #{_lambda_.2} parent=5 // pred_check_branch
        %381 = sbr.rel (%p378) target = $region98
      $region97: #{_lambda_.2} parent=5 // pred_region
        %s382 = ssub.s32 %s19, 1
        %s383 = sand.u32 %s32, 1
        %s384 = sand.u32 %s32, 1
        %s385 = smul.addr %s384, 16
        %s386 = scalar_lea.vmem [#allocation3], %s385
        // Predicated region
        $region99: #{_lambda_.2} parent=97 // pred_check
          %p387 = pneg %p45
        $region100: #{_lambda_.2} parent=97 // pred_check_branch
          %389 = sbr.rel (%p387) target = $region102
        $region101: #{_lambda_.2} parent=97 // pred_region
          _
        $region102: #{_lambda_.2} parent=97 // pred_fallthru
          _
        %s390 = sand.u32 %s32, 1
        %s391 = sand.u32 %s32, 1
        %s392 = smul.addr %s391, 16
        %s393 = scalar_lea.vmem [#allocation3], %s392
        %p394 = pneg %p45
        %p395 = pneg %p42
        %p396 = pneg %p66
        %p397 = pneg %p63
        %p398 = pneg %p87
        %p399 = pneg %p84
        %p400 = pneg %p108
        %p401 = pneg %p105
        %p402 = pneg %p129
        %p403 = pneg %p126
        %p404 = pneg %p150
        %p405 = pneg %p147
        %p406 = pneg %p171
        %p407 = pneg %p168
        %p408 = pneg %p192
        %p409 = pneg %p189
        %p410 = pneg %p213
        %p411 = pneg %p210
        %p412 = pneg %p234
        %p413 = pneg %p231
        %p414 = pneg %p255
        %p415 = pneg %p252
        %p416 = pneg %p281
        %p417 = pneg %p278
        %s418 = sand.u32 %s268, 1
        %s419 = sand.u32 %s268, 1
        %s420 = smul.addr %s419, 32
        %s421 = scalar_lea.vmem [#allocation4], %s420
        %s422 = smul.u32 2, %s24
        %s423 = smul.u32 2, %s24
        %v425 = vld [vmem:[%s386] sm:$0xff]
        %v426 = vld [vmem:[%s386 + $0x8] sm:$0xff]
        %v427 = vld [vmem:[%s1] sm:$0xf]
        %v428 = vld [vmem:[%s1 + $0x4] sm:$0xf]
        %v429 = vld [vmem:[%s1 + $0x8] sm:$0xf]
        %v430 = vld [vmem:[%s1 + $0xc] sm:$0xf]
        %v431 = vld [vmem:[%s1 + $0x10] sm:$0xf]
        %v432 = vld [vmem:[%s1 + $0x14] sm:$0xf]
        %v433 = vld [vmem:[%s1 + $0x18] sm:$0xf]
        %v434 = vld [vmem:[%s1 + $0x1c] sm:$0xf]
        %v443 = vunpack.c.l.b16 %v427
        %v444 = vunpack.c.l.b16 %v428
        %v445 = vunpack.c.l.b16 %v429
        %v446 = vunpack.c.l.b16 %v430
        %v447 = vunpack.c.l.b16 %v431
        %v448 = vunpack.c.l.b16 %v432
        %v449 = vunpack.c.l.b16 %v433
        %v450 = vunpack.c.l.b16 %v434
        %v451 = vpack.c.b16 %v444, %v443
        %v452 = vpack.c.b16 %v446, %v445
        %v453 = vpack.c.b16 %v448, %v447
        %v454 = vpack.c.b16 %v450, %v449
        %v457 = vunpack.c.l.b16 %v425
        %v458 = vunpack.c.h.b16 %v425
        %v459 = vunpack.c.l.b16 %v426
        %v460 = vunpack.c.h.b16 %v426
        %v461 = vpack.c.b16 %v459, %v457
        %v462 = vpack.c.b16 %v460, %v458
        %vm465 = vcmask 130048
        %v467 = vsel %vm465, %v451, 0
        %v470 = vsel %vm465, %v452, 0
        %v473 = vsel %vm465, %v453, 0
        %v476 = vsel %vm465, %v454, 0
        %478 = vmatprep.subr.bf16.mxu0 %v462
        %479 = vmatpush1.bf16.msra.mxu0 %v461
        %480 = vmatprep.subr.bf16.mxu0 0
        %481 = vmatpush1.bf16.msra.mxu0 0
        %482 = vmatprep.subr.bf16.mxu0 0
        %483 = vmatpush1.bf16.msra.mxu0 0
        %484 = vmatprep.subr.bf16.mxu0 0
        %485 = vmatpush1.bf16.msra.mxu0 0
        %486 = vmatprep.subr.bf16.mxu0 0
        %487 = vmatpush1.bf16.msra.mxu0 0
        %488 = vmatprep.subr.bf16.mxu0 0
        %489 = vmatpush1.bf16.msra.mxu0 0
        %490 = vmatprep.subr.bf16.mxu0 0
        %491 = vmatpush1.bf16.msra.mxu0 0
        %492 = vmatprep.subr.bf16.mxu0 0
        %493 = vmatpush1.bf16.msra.mxu0 0
        %494 = vmatprep.subr.bf16.mxu0 0
        %495 = vmatpush1.bf16.msra.mxu0 0
        %496 = vmatprep.subr.bf16.mxu0 0
        %497 = vmatpush1.bf16.msra.mxu0 0
        %498 = vmatprep.subr.bf16.mxu0 0
        %499 = vmatpush1.bf16.msra.mxu0 0
        %500 = vmatprep.subr.bf16.mxu0 0
        %501 = vmatpush1.bf16.msra.mxu0 0
        %502 = vmatprep.subr.bf16.mxu0 0
        %503 = vmatpush1.bf16.msra.mxu0 0
        %504 = vmatprep.subr.bf16.mxu0 0
        %505 = vmatpush1.bf16.msra.mxu0 0
        %506 = vmatprep.subr.bf16.mxu0 0
        %507 = vmatpush1.bf16.msra.mxu0 0
        %508 = vmatprep.subr.bf16.mxu0 0
        %509 = vmatpush1.bf16.msra.mxu0 0
        %510 = vmatprep.mubr.bf16.mxu0 0
        %511 = vmatmul.mubr.bf16.gmra.mrb[0].mxu0 %v467
        %v512 = vpop.f32.mrb[0].mxu0
        %v513 = vadd.f32 0.0, %v512
        %v514 = vpop.f32.mrb[0].mxu0
        %v515 = vadd.f32 0.0, %v514
        %v516 = vpop.f32.mrb[0].mxu0
        %v517 = vadd.f32 0.0, %v516
        %v518 = vpop.f32.mrb[0].mxu0
        %v519 = vadd.f32 0.0, %v518
        %520 = vmatprep.mubr.bf16.mxu0 0
        %521 = vmatmul.mubr.bf16.gmra.mrb[0].mxu0 %v470
        %v522 = vpop.f32.mrb[0].mxu0
        %v523 = vadd.f32 0.0, %v522
        %v524 = vpop.f32.mrb[0].mxu0
        %v525 = vadd.f32 0.0, %v524
        %v526 = vpop.f32.mrb[0].mxu0
        %v527 = vadd.f32 0.0, %v526
        %v528 = vpop.f32.mrb[0].mxu0
        %v529 = vadd.f32 0.0, %v528
        %530 = vmatprep.mubr.bf16.mxu0 0
        %531 = vmatmul.mubr.bf16.gmra.mrb[0].mxu0 %v473
        %v532 = vpop.f32.mrb[0].mxu0
        %v533 = vadd.f32 0.0, %v532
        %v534 = vpop.f32.mrb[0].mxu0
        %v535 = vadd.f32 0.0, %v534
        %v536 = vpop.f32.mrb[0].mxu0
        %v537 = vadd.f32 0.0, %v536
        %v538 = vpop.f32.mrb[0].mxu0
        %v539 = vadd.f32 0.0, %v538
        %540 = vmatprep.mubr.bf16.mxu0 0
        %541 = vmatmul.mubr.bf16.gmra.mrb[0].mxu0 %v476
        %v542 = vpop.f32.mrb[0].mxu0
        %v543 = vadd.f32 0.0, %v542
        %v544 = vpop.f32.mrb[0].mxu0
        %v545 = vadd.f32 0.0, %v544
        %v546 = vpop.f32.mrb[0].mxu0
        %v547 = vadd.f32 0.0, %v546
        %v548 = vpop.f32.mrb[0].mxu0
        %v549 = vadd.f32 0.0, %v548
        %550 = vdwg.mxu0
        %v551 = vld [vmem:[%s2] sm:$0xff]
        %v552 = vld [vmem:[%s2 + $0x8] sm:$0xff]
        %v553 = vld [vmem:[%s2 + $0x10] sm:$0xff]
        %v554 = vld [vmem:[%s2 + $0x18] sm:$0xff]
        %556 = vset.pattern.permute.xlu0 0
        %557 = vperm.xlu0 %556, %v551
        %v558 = vpop.permute.xlu0 %557
        %561 = vset.pattern.permute.xlu0 0
        %562 = vperm.xlu0 %561, %v552
        %v563 = vpop.permute.xlu0 %562
        %566 = vset.pattern.permute.xlu0 0
        %567 = vperm.xlu0 %566, %v553
        %v568 = vpop.permute.xlu0 %567
        %571 = vset.pattern.permute.xlu0 0
        %572 = vperm.xlu0 %571, %v554
        %v573 = vpop.permute.xlu0 %572
        %v575 = vadd.f32 %v513, %v558
        %v576 = vadd.f32 %v515, %v558
        %v577 = vadd.f32 %v517, %v563
        %v578 = vadd.f32 %v519, %v563
        %v579 = vadd.f32 %v523, %v568
        %v580 = vadd.f32 %v525, %v568
        %v581 = vadd.f32 %v527, %v573
        %v582 = vadd.f32 %v529, %v573
        %v583 = vmax.f32 %v575, 0.0
        %v584 = vmax.f32 %v576, 0.0
        %v585 = vmax.f32 %v577, 0.0
        %v586 = vmax.f32 %v578, 0.0
        %v587 = vmax.f32 %v579, 0.0
        %v588 = vmax.f32 %v580, 0.0
        %v589 = vmax.f32 %v581, 0.0
        %v590 = vmax.f32 %v582, 0.0
        %v591 = vld [vmem:[%s3] sm:$0xf]
        %v592 = vld [vmem:[%s3 + $0x4] sm:$0xf]
        %v593 = vld [vmem:[%s3 + $0x8] sm:$0xf]
        %v594 = vld [vmem:[%s3 + $0xc] sm:$0xf]
        %v595 = vpack.c.bf16 %v585, %v583
        %v596 = vpack.c.bf16 %v586, %v584
        %v597 = vpack.c.bf16 %v589, %v587
        %v598 = vpack.c.bf16 %v590, %v588
        %v599 = vld [vmem:[%s4] sm:$0xff]
        %v600 = vld [vmem:[%s4 + $0x8] sm:$0xff]
        %v601 = vld [vmem:[%s4 + $0x10] sm:$0xff]
        %v602 = vld [vmem:[%s4 + $0x18] sm:$0xff]
        %604 = vset.pattern.permute.xlu0 0
        %605 = vperm.xlu0 %604, %v599
        %v606 = vpop.permute.xlu0 %605
        %609 = vset.pattern.permute.xlu0 0
        %610 = vperm.xlu0 %609, %v600
        %v611 = vpop.permute.xlu0 %610
        %614 = vset.pattern.permute.xlu0 0
        %615 = vperm.xlu0 %614, %v601
        %v616 = vpop.permute.xlu0 %615
        %619 = vset.pattern.permute.xlu0 0
        %620 = vperm.xlu0 %619, %v602
        %v621 = vpop.permute.xlu0 %620
        %v627 = vunpack.c.l.b16 %v591
        %v628 = vunpack.c.l.b16 %v592
        %v629 = vunpack.c.l.b16 %v593
        %v630 = vunpack.c.l.b16 %v594
        %v631 = vpack.c.b16 %v628, %v627
        %v632 = vpack.c.b16 %v630, %v629
        %vm633 = vcmask 261120
        %v635 = vsel %vm633, %v631, 0
        %v638 = vsel %vm633, %v632, 0
        %640 = vmatprep.subr.bf16.mxu0 %v596
        %641 = vmatpush1.bf16.msra.mxu0 %v595
        %642 = vmatprep.subr.bf16.mxu0 %v598
        %643 = vmatpush1.bf16.msra.mxu0 %v597
        %644 = vmatprep.subr.bf16.mxu0 0
        %645 = vmatpush1.bf16.msra.mxu0 0
        %646 = vmatprep.subr.bf16.mxu0 0
        %647 = vmatpush1.bf16.msra.mxu0 0
        %648 = vmatprep.subr.bf16.mxu0 0
        %649 = vmatpush1.bf16.msra.mxu0 0
        %650 = vmatprep.subr.bf16.mxu0 0
        %651 = vmatpush1.bf16.msra.mxu0 0
        %652 = vmatprep.subr.bf16.mxu0 0
        %653 = vmatpush1.bf16.msra.mxu0 0
        %654 = vmatprep.subr.bf16.mxu0 0
        %655 = vmatpush1.bf16.msra.mxu0 0
        %656 = vmatprep.subr.bf16.mxu0 0
        %657 = vmatpush1.bf16.msra.mxu0 0
        %658 = vmatprep.subr.bf16.mxu0 0
        %659 = vmatpush1.bf16.msra.mxu0 0
        %660 = vmatprep.subr.bf16.mxu0 0
        %661 = vmatpush1.bf16.msra.mxu0 0
        %662 = vmatprep.subr.bf16.mxu0 0
        %663 = vmatpush1.bf16.msra.mxu0 0
        %664 = vmatprep.subr.bf16.mxu0 0
        %665 = vmatpush1.bf16.msra.mxu0 0
        %666 = vmatprep.subr.bf16.mxu0 0
        %667 = vmatpush1.bf16.msra.mxu0 0
        %668 = vmatprep.subr.bf16.mxu0 0
        %669 = vmatpush1.bf16.msra.mxu0 0
        %670 = vmatprep.subr.bf16.mxu0 0
        %671 = vmatpush1.bf16.msra.mxu0 0
        %672 = vmatprep.mubr.bf16.mxu0 0
        %673 = vmatmul.mubr.bf16.gmra.mrb[0].mxu0 %v635
        %v674 = vpop.f32.mrb[0].mxu0
        %v675 = vadd.f32 %v606, %v674
        %v676 = vpop.f32.mrb[0].mxu0
        %v677 = vadd.f32 %v606, %v676
        %v678 = vpop.f32.mrb[0].mxu0
        %v679 = vadd.f32 %v611, %v678
        %v680 = vpop.f32.mrb[0].mxu0
        %v681 = vadd.f32 %v611, %v680
        %682 = vmatprep.mubr.bf16.mxu0 0
        %683 = vmatmul.mubr.bf16.gmra.mrb[0].mxu0 %v638
        %v684 = vpop.f32.mrb[0].mxu0
        %v685 = vadd.f32 %v616, %v684
        %v686 = vpop.f32.mrb[0].mxu0
        %v687 = vadd.f32 %v616, %v686
        %v688 = vpop.f32.mrb[0].mxu0
        %v689 = vadd.f32 %v621, %v688
        %v690 = vpop.f32.mrb[0].mxu0
        %v691 = vadd.f32 %v621, %v690
        %692 = vdwg.mxu0
        %v693 = vmax.f32 %v675, 0.0
        %v694 = vmax.f32 %v677, 0.0
        %v695 = vmax.f32 %v679, 0.0
        %v696 = vmax.f32 %v681, 0.0
        %v697 = vmax.f32 %v685, 0.0
        %v698 = vmax.f32 %v687, 0.0
        %v699 = vmax.f32 %v689, 0.0
        %v700 = vmax.f32 %v691, 0.0
        %v701 = vld [vmem:[%s5] sm:$0xf]
        %v702 = vld [vmem:[%s5 + $0x4] sm:$0xf]
        %v703 = vpack.c.bf16 %v695, %v693
        %v704 = vpack.c.bf16 %v696, %v694
        %v705 = vpack.c.bf16 %v699, %v697
        %v706 = vpack.c.bf16 %v700, %v698
        %v707 = vld [vmem:[%s6] sm:$0xff]
        %v708 = vld [vmem:[%s6 + $0x8] sm:$0xff]
        %710 = vset.pattern.permute.xlu0 0
        %711 = vperm.xlu0 %710, %v707
        %v712 = vpop.permute.xlu0 %711
        %715 = vset.pattern.permute.xlu0 0
        %716 = vperm.xlu0 %715, %v708
        %v717 = vpop.permute.xlu0 %716
        %v721 = vunpack.c.l.b16 %v701
        %v722 = vunpack.c.l.b16 %v702
        %v723 = vpack.c.b16 %v722, %v721
        %v725 = vsel %vm633, %v723, 0
        %727 = vmatprep.subr.bf16.mxu0 %v704
        %728 = vmatpush1.bf16.msra.mxu0 %v703
        %729 = vmatprep.subr.bf16.mxu0 %v706
        %730 = vmatpush1.bf16.msra.mxu0 %v705
        %731 = vmatprep.subr.bf16.mxu0 0
        %732 = vmatpush1.bf16.msra.mxu0 0
        %733 = vmatprep.subr.bf16.mxu0 0
        %734 = vmatpush1.bf16.msra.mxu0 0
        %735 = vmatprep.subr.bf16.mxu0 0
        %736 = vmatpush1.bf16.msra.mxu0 0
        %737 = vmatprep.subr.bf16.mxu0 0
        %738 = vmatpush1.bf16.msra.mxu0 0
        %739 = vmatprep.subr.bf16.mxu0 0
        %740 = vmatpush1.bf16.msra.mxu0 0
        %741 = vmatprep.subr.bf16.mxu0 0
        %742 = vmatpush1.bf16.msra.mxu0 0
        %743 = vmatprep.subr.bf16.mxu0 0
        %744 = vmatpush1.bf16.msra.mxu0 0
        %745 = vmatprep.subr.bf16.mxu0 0
        %746 = vmatpush1.bf16.msra.mxu0 0
        %747 = vmatprep.subr.bf16.mxu0 0
        %748 = vmatpush1.bf16.msra.mxu0 0
        %749 = vmatprep.subr.bf16.mxu0 0
        %750 = vmatpush1.bf16.msra.mxu0 0
        %751 = vmatprep.subr.bf16.mxu0 0
        %752 = vmatpush1.bf16.msra.mxu0 0
        %753 = vmatprep.subr.bf16.mxu0 0
        %754 = vmatpush1.bf16.msra.mxu0 0
        %755 = vmatprep.subr.bf16.mxu0 0
        %756 = vmatpush1.bf16.msra.mxu0 0
        %757 = vmatprep.subr.bf16.mxu0 0
        %758 = vmatpush1.bf16.msra.mxu0 0
        %759 = vmatprep.mubr.bf16.mxu0 0
        %760 = vmatmul.mubr.bf16.gmra.mrb[0].mxu0 %v725
        %v761 = vpop.f32.mrb[0].mxu0
        %v762 = vadd.f32 %v712, %v761
        %v763 = vpop.f32.mrb[0].mxu0
        %v764 = vadd.f32 %v712, %v763
        %v765 = vpop.f32.mrb[0].mxu0
        %v766 = vadd.f32 %v717, %v765
        %v767 = vpop.f32.mrb[0].mxu0
        %v768 = vadd.f32 %v717, %v767
        %769 = vdwg.mxu0
        %v770 = vmax.f32 %v762, 0.0
        %v771 = vmax.f32 %v764, 0.0
        %v772 = vmax.f32 %v766, 0.0
        %v773 = vmax.f32 %v768, 0.0
        %v774 = vld [vmem:[%s7] sm:$0xff]
        %v775 = vld [vmem:[%s7 + $0x8] sm:$0xff]
        %777 = vset.pattern.permute.xlu0 0
        %778 = vperm.xlu0 %777, %v774
        %v779 = vpop.permute.xlu0 %778
        %782 = vset.pattern.permute.xlu0 0
        %783 = vperm.xlu0 %782, %v775
        %v784 = vpop.permute.xlu0 %783
        %v786 = vmul.f32 %v770, %v779
        %v787 = vmul.f32 %v771, %v779
        %v788 = vmul.f32 %v772, %v784
        %v789 = vmul.f32 %v773, %v784
        %v790 = vadd.f32 %v786, %v788
        %v791 = vrot.slane %v790, 4
        %v792 = vadd.f32 %v790, %v791
        %v793 = vrot.slane %v792, 2
        %v794 = vadd.f32 %v792, %v793
        %v795 = vrot.slane %v794, 1
        %v796 = vadd.f32 %v794, %v795
        %v797 = vadd.f32 %v787, %v789
        %v798 = vrot.slane %v797, 4
        %v799 = vadd.f32 %v797, %v798
        %v800 = vrot.slane %v799, 2
        %v801 = vadd.f32 %v799, %v800
        %v802 = vrot.slane %v801, 1
        %v803 = vadd.f32 %v801, %v802
        %v804 = vld [vmem:[#allocation2] sm:$0x1]
        %806 = vset.pattern.permute.xlu0 0
        %807 = vperm.xlu0 %806, %v804
        %v808 = vpop.permute.xlu0 %807
        %v810 = vlaneseq
        %v811 = vshrl.u32 %v810, 7
        %v812 = vsub.s32 0, %v811
        %v813 = vrot.slane %v808, %v812
        %v814 = vadd.f32 %v796, %v813
        %v815 = vadd.f32 %v803, %v813
        %v816 = vmul.f32 %v533, 0.20680597
        %v817 = vmul.f32 %v535, 0.20680597
        %v818 = vmul.f32 %v537, 0.20680597
        %v819 = vmul.f32 %v539, 0.20680597
        %v820 = vmul.f32 %v543, 0.20680597
        %v821 = vmul.f32 %v545, 0.20680597
        %v822 = vmul.f32 %v547, 0.20680597
        %v823 = vmul.f32 %v549, 0.20680597
        %v824 = vld [vmem:[%s9] sm:$0xf]
        %v825 = vld [vmem:[%s9 + $0x4] sm:$0xf]
        %v826 = vld [vmem:[%s9 + $0x8] sm:$0xf]
        %v827 = vld [vmem:[%s9 + $0xc] sm:$0xf]
        %v828 = vand.u32 2147483647, %v533
        %v829 = vand.u32 2147483647, %v535
        %v830 = vand.u32 2147483647, %v537
        %v831 = vand.u32 2147483647, %v539
        %v832 = vand.u32 2147483647, %v543
        %v833 = vand.u32 2147483647, %v545
        %v834 = vand.u32 2147483647, %v547
        %v835 = vand.u32 2147483647, %v549
        %v836 = vsub.f32 %v828, %v814
        %v837 = vsub.f32 %v829, %v815
        %v838 = vsub.f32 %v830, %v814
        %v839 = vsub.f32 %v831, %v815
        %v840 = vsub.f32 %v832, %v814
        %v841 = vsub.f32 %v833, %v815
        %v842 = vsub.f32 %v834, %v814
        %v843 = vsub.f32 %v835, %v815
        %v844 = vmax.f32 %v836, 0.0
        %v845 = vmax.f32 %v837, 0.0
        %v846 = vmax.f32 %v838, 0.0
        %v847 = vmax.f32 %v839, 0.0
        %v848 = vmax.f32 %v840, 0.0
        %v849 = vmax.f32 %v841, 0.0
        %v850 = vmax.f32 %v842, 0.0
        %v851 = vmax.f32 %v843, 0.0
        %vm852 = vcmp.gt.f32.partialorder %v533, 0.0
        %vm853 = vcmp.gt.f32.partialorder %v535, 0.0
        %vm854 = vcmp.gt.f32.partialorder %v537, 0.0
        %vm855 = vcmp.gt.f32.partialorder %v539, 0.0
        %vm856 = vcmp.gt.f32.partialorder %v543, 0.0
        %vm857 = vcmp.gt.f32.partialorder %v545, 0.0
        %vm858 = vcmp.gt.f32.partialorder %v547, 0.0
        %vm859 = vcmp.gt.f32.partialorder %v549, 0.0
        %vm860 = vcmp.lt.f32.partialorder %v533, 0.0
        %vm861 = vcmp.lt.f32.partialorder %v535, 0.0
        %vm862 = vcmp.lt.f32.partialorder %v537, 0.0
        %vm863 = vcmp.lt.f32.partialorder %v539, 0.0
        %vm864 = vcmp.lt.f32.partialorder %v543, 0.0
        %vm865 = vcmp.lt.f32.partialorder %v545, 0.0
        %vm866 = vcmp.lt.f32.partialorder %v547, 0.0
        %vm867 = vcmp.lt.f32.partialorder %v549, 0.0
        %v868 = vsub.f32 0.0, %v844
        %v869 = vsub.f32 0.0, %v845
        %v870 = vsub.f32 0.0, %v846
        %v871 = vsub.f32 0.0, %v847
        %v872 = vsub.f32 0.0, %v848
        %v873 = vsub.f32 0.0, %v849
        %v874 = vsub.f32 0.0, %v850
        %v875 = vsub.f32 0.0, %v851
        %v876 = vsel %vm860, %v868, 0.0
        %v877 = vsel %vm861, %v869, 0.0
        %v878 = vsel %vm862, %v870, 0.0
        %v879 = vsel %vm863, %v871, 0.0
        %v880 = vsel %vm864, %v872, 0.0
        %v881 = vsel %vm865, %v873, 0.0
        %v882 = vsel %vm866, %v874, 0.0
        %v883 = vsel %vm867, %v875, 0.0
        %v884 = vsel %vm852, %v844, %v876
        %v885 = vsel %vm853, %v845, %v877
        %v886 = vsel %vm854, %v846, %v878
        %v887 = vsel %vm855, %v847, %v879
        %v888 = vsel %vm856, %v848, %v880
        %v889 = vsel %vm857, %v849, %v881
        %v890 = vsel %vm858, %v850, %v882
        %v891 = vsel %vm859, %v851, %v883
        %v892 = vpack.c.bf16 %v886, %v884
        %v893 = vpack.c.bf16 %v887, %v885
        %v894 = vpack.c.bf16 %v890, %v888
        %v895 = vpack.c.bf16 %v891, %v889
        %v900 = vunpack.c.l.b16 %v824
        %v901 = vunpack.c.l.b16 %v825
        %v902 = vunpack.c.l.b16 %v826
        %v903 = vunpack.c.l.b16 %v827
        %v904 = vpack.c.b16 %v901, %v900
        %v905 = vpack.c.b16 %v903, %v902
        %v907 = vsel %vm633, %v904, 0
        %v910 = vsel %vm633, %v905, 0
        %912 = vmatprep.subr.bf16.mxu0 %v893
        %913 = vmatpush1.bf16.msra.mxu0 %v892
        %914 = vmatprep.subr.bf16.mxu0 %v895
        %915 = vmatpush1.bf16.msra.mxu0 %v894
        %916 = vmatprep.subr.bf16.mxu0 0
        %917 = vmatpush1.bf16.msra.mxu0 0
        %918 = vmatprep.subr.bf16.mxu0 0
        %919 = vmatpush1.bf16.msra.mxu0 0
        %920 = vmatprep.subr.bf16.mxu0 0
        %921 = vmatpush1.bf16.msra.mxu0 0
        %922 = vmatprep.subr.bf16.mxu0 0
        %923 = vmatpush1.bf16.msra.mxu0 0
        %924 = vmatprep.subr.bf16.mxu0 0
        %925 = vmatpush1.bf16.msra.mxu0 0
        %926 = vmatprep.subr.bf16.mxu0 0
        %927 = vmatpush1.bf16.msra.mxu0 0
        %928 = vmatprep.subr.bf16.mxu0 0
        %929 = vmatpush1.bf16.msra.mxu0 0
        %930 = vmatprep.subr.bf16.mxu0 0
        %931 = vmatpush1.bf16.msra.mxu0 0
        %932 = vmatprep.subr.bf16.mxu0 0
        %933 = vmatpush1.bf16.msra.mxu0 0
        %934 = vmatprep.subr.bf16.mxu0 0
        %935 = vmatpush1.bf16.msra.mxu0 0
        %936 = vmatprep.subr.bf16.mxu0 0
        %937 = vmatpush1.bf16.msra.mxu0 0
        %938 = vmatprep.subr.bf16.mxu0 0
        %939 = vmatpush1.bf16.msra.mxu0 0
        %940 = vmatprep.subr.bf16.mxu0 0
        %941 = vmatpush1.bf16.msra.mxu0 0
        %942 = vmatprep.subr.bf16.mxu0 0
        %943 = vmatpush1.bf16.msra.mxu0 0
        %944 = vmatprep.mubr.bf16.mxu0 0
        %945 = vmatmul.mubr.bf16.gmra.mrb[0].mxu0 %v907
        %v946 = vpop.f32.mrb[0].mxu0
        %v947 = vadd.f32 %v816, %v946
        %v948 = vpop.f32.mrb[0].mxu0
        %v949 = vadd.f32 %v817, %v948
        %v950 = vpop.f32.mrb[0].mxu0
        %v951 = vadd.f32 %v818, %v950
        %v952 = vpop.f32.mrb[0].mxu0
        %v953 = vadd.f32 %v819, %v952
        %954 = vmatprep.mubr.bf16.mxu0 0
        %955 = vmatmul.mubr.bf16.gmra.mrb[0].mxu0 %v910
        %v956 = vpop.f32.mrb[0].mxu0
        %v957 = vadd.f32 %v820, %v956
        %v958 = vpop.f32.mrb[0].mxu0
        %v959 = vadd.f32 %v821, %v958
        %v960 = vpop.f32.mrb[0].mxu0
        %v961 = vadd.f32 %v822, %v960
        %v962 = vpop.f32.mrb[0].mxu0
        %v963 = vadd.f32 %v823, %v962
        %964 = vdwg.mxu0
        %v965 = vand.u32 2147483647, %v947
        %v966 = vand.u32 2147483647, %v949
        %v967 = vand.u32 2147483647, %v951
        %v968 = vand.u32 2147483647, %v953
        %v969 = vand.u32 2147483647, %v957
        %v970 = vand.u32 2147483647, %v959
        %v971 = vand.u32 2147483647, %v961
        %v972 = vand.u32 2147483647, %v963
        %v973 = vsub.f32 %v965, %v814
        %v974 = vsub.f32 %v966, %v815
        %v975 = vsub.f32 %v967, %v814
        %v976 = vsub.f32 %v968, %v815
        %v977 = vsub.f32 %v969, %v814
        %v978 = vsub.f32 %v970, %v815
        %v979 = vsub.f32 %v971, %v814
        %v980 = vsub.f32 %v972, %v815
        %v981 = vmax.f32 %v973, 0.0
        %v982 = vmax.f32 %v974, 0.0
        %v983 = vmax.f32 %v975, 0.0
        %v984 = vmax.f32 %v976, 0.0
        %v985 = vmax.f32 %v977, 0.0
        %v986 = vmax.f32 %v978, 0.0
        %v987 = vmax.f32 %v979, 0.0
        %v988 = vmax.f32 %v980, 0.0
        %vm989 = vcmp.gt.f32.partialorder %v947, 0.0
        %vm990 = vcmp.gt.f32.partialorder %v949, 0.0
        %vm991 = vcmp.gt.f32.partialorder %v951, 0.0
        %vm992 = vcmp.gt.f32.partialorder %v953, 0.0
        %vm993 = vcmp.gt.f32.partialorder %v957, 0.0
        %vm994 = vcmp.gt.f32.partialorder %v959, 0.0
        %vm995 = vcmp.gt.f32.partialorder %v961, 0.0
        %vm996 = vcmp.gt.f32.partialorder %v963, 0.0
        %vm997 = vcmp.lt.f32.partialorder %v947, 0.0
        %vm998 = vcmp.lt.f32.partialorder %v949, 0.0
        %vm999 = vcmp.lt.f32.partialorder %v951, 0.0
        %vm1000 = vcmp.lt.f32.partialorder %v953, 0.0
        %vm1001 = vcmp.lt.f32.partialorder %v957, 0.0
        %vm1002 = vcmp.lt.f32.partialorder %v959, 0.0
        %vm1003 = vcmp.lt.f32.partialorder %v961, 0.0
        %vm1004 = vcmp.lt.f32.partialorder %v963, 0.0
        %v1005 = vsub.f32 0.0, %v981
        %v1006 = vsub.f32 0.0, %v982
        %v1007 = vsub.f32 0.0, %v983
        %v1008 = vsub.f32 0.0, %v984
        %v1009 = vsub.f32 0.0, %v985
        %v1010 = vsub.f32 0.0, %v986
        %v1011 = vsub.f32 0.0, %v987
        %v1012 = vsub.f32 0.0, %v988
        %v1013 = vsel %vm997, %v1005, 0.0
        %v1014 = vsel %vm998, %v1006, 0.0
        %v1015 = vsel %vm999, %v1007, 0.0
        %v1016 = vsel %vm1000, %v1008, 0.0
        %v1017 = vsel %vm1001, %v1009, 0.0
        %v1018 = vsel %vm1002, %v1010, 0.0
        %v1019 = vsel %vm1003, %v1011, 0.0
        %v1020 = vsel %vm1004, %v1012, 0.0
        %v1021 = vsel %vm989, %v981, %v1013
        %v1022 = vsel %vm990, %v982, %v1014
        %v1023 = vsel %vm991, %v983, %v1015
        %v1024 = vsel %vm992, %v984, %v1016
        %v1025 = vsel %vm993, %v985, %v1017
        %v1026 = vsel %vm994, %v986, %v1018
        %v1027 = vsel %vm995, %v987, %v1019
        %v1028 = vsel %vm996, %v988, %v1020
        %v1029 = vpack.c.bf16 %v1023, %v1021
        %v1030 = vpack.c.bf16 %v1024, %v1022
        %v1031 = vpack.c.bf16 %v1027, %v1025
        %v1032 = vpack.c.bf16 %v1028, %v1026
        %1033 = vmatprep.subr.bf16.mxu0 %v1030
        %1034 = vmatpush1.bf16.msra.mxu0 %v1029
        %1035 = vmatprep.subr.bf16.mxu0 %v1032
        %1036 = vmatpush1.bf16.msra.mxu0 %v1031
        %1037 = vmatprep.subr.bf16.mxu0 0
        %1038 = vmatpush1.bf16.msra.mxu0 0
        %1039 = vmatprep.subr.bf16.mxu0 0
        %1040 = vmatpush1.bf16.msra.mxu0 0
        %1041 = vmatprep.subr.bf16.mxu0 0
        %1042 = vmatpush1.bf16.msra.mxu0 0
        %1043 = vmatprep.subr.bf16.mxu0 0
        %1044 = vmatpush1.bf16.msra.mxu0 0
        %1045 = vmatprep.subr.bf16.mxu0 0
        %1046 = vmatpush1.bf16.msra.mxu0 0
        %1047 = vmatprep.subr.bf16.mxu0 0
        %1048 = vmatpush1.bf16.msra.mxu0 0
        %1049 = vmatprep.subr.bf16.mxu0 0
        %1050 = vmatpush1.bf16.msra.mxu0 0
        %1051 = vmatprep.subr.bf16.mxu0 0
        %1052 = vmatpush1.bf16.msra.mxu0 0
        %1053 = vmatprep.subr.bf16.mxu0 0
        %1054 = vmatpush1.bf16.msra.mxu0 0
        %1055 = vmatprep.subr.bf16.mxu0 0
        %1056 = vmatpush1.bf16.msra.mxu0 0
        %1057 = vmatprep.subr.bf16.mxu0 0
        %1058 = vmatpush1.bf16.msra.mxu0 0
        %1059 = vmatprep.subr.bf16.mxu0 0
        %1060 = vmatpush1.bf16.msra.mxu0 0
        %1061 = vmatprep.subr.bf16.mxu0 0
        %1062 = vmatpush1.bf16.msra.mxu0 0
        %1063 = vmatprep.subr.bf16.mxu0 0
        %1064 = vmatpush1.bf16.msra.mxu0 0
        %1065 = vmatprep.mubr.bf16.mxu0 0
        %1066 = vmatmul.mubr.bf16.gmra.mrb[0].mxu0 %v907
        %v1067 = vpop.f32.mrb[0].mxu0
        %v1068 = vadd.f32 %v816, %v1067
        %v1069 = vpop.f32.mrb[0].mxu0
        %v1070 = vadd.f32 %v817, %v1069
        %v1071 = vpop.f32.mrb[0].mxu0
        %v1072 = vadd.f32 %v818, %v1071
        %v1073 = vpop.f32.mrb[0].mxu0
        %v1074 = vadd.f32 %v819, %v1073
        %1075 = vmatprep.mubr.bf16.mxu0 0
        %1076 = vmatmul.mubr.bf16.gmra.mrb[0].mxu0 %v910
        %v1077 = vpop.f32.mrb[0].mxu0
        %v1078 = vadd.f32 %v820, %v1077
        %v1079 = vpop.f32.mrb[0].mxu0
        %v1080 = vadd.f32 %v821, %v1079
        %v1081 = vpop.f32.mrb[0].mxu0
        %v1082 = vadd.f32 %v822, %v1081
        %v1083 = vpop.f32.mrb[0].mxu0
        %v1084 = vadd.f32 %v823, %v1083
        %1085 = vdwg.mxu0
        %v1086 = vand.u32 2147483647, %v1068
        %v1087 = vand.u32 2147483647, %v1070
        %v1088 = vand.u32 2147483647, %v1072
        %v1089 = vand.u32 2147483647, %v1074
        %v1090 = vand.u32 2147483647, %v1078
        %v1091 = vand.u32 2147483647, %v1080
        %v1092 = vand.u32 2147483647, %v1082
        %v1093 = vand.u32 2147483647, %v1084
        %v1094 = vsub.f32 %v1086, %v814
        %v1095 = vsub.f32 %v1087, %v815
        %v1096 = vsub.f32 %v1088, %v814
        %v1097 = vsub.f32 %v1089, %v815
        %v1098 = vsub.f32 %v1090, %v814
        %v1099 = vsub.f32 %v1091, %v815
        %v1100 = vsub.f32 %v1092, %v814
        %v1101 = vsub.f32 %v1093, %v815
        %v1102 = vmax.f32 %v1094, 0.0
        %v1103 = vmax.f32 %v1095, 0.0
        %v1104 = vmax.f32 %v1096, 0.0
        %v1105 = vmax.f32 %v1097, 0.0
        %v1106 = vmax.f32 %v1098, 0.0
        %v1107 = vmax.f32 %v1099, 0.0
        %v1108 = vmax.f32 %v1100, 0.0
        %v1109 = vmax.f32 %v1101, 0.0
        %vm1110 = vcmp.gt.f32.partialorder %v1068, 0.0
        %vm1111 = vcmp.gt.f32.partialorder %v1070, 0.0
        %vm1112 = vcmp.gt.f32.partialorder %v1072, 0.0
        %vm1113 = vcmp.gt.f32.partialorder %v1074, 0.0
        %vm1114 = vcmp.gt.f32.partialorder %v1078, 0.0
        %vm1115 = vcmp.gt.f32.partialorder %v1080, 0.0
        %vm1116 = vcmp.gt.f32.partialorder %v1082, 0.0
        %vm1117 = vcmp.gt.f32.partialorder %v1084, 0.0
        %vm1118 = vcmp.lt.f32.partialorder %v1068, 0.0
        %vm1119 = vcmp.lt.f32.partialorder %v1070, 0.0
        %vm1120 = vcmp.lt.f32.partialorder %v1072, 0.0
        %vm1121 = vcmp.lt.f32.partialorder %v1074, 0.0
        %vm1122 = vcmp.lt.f32.partialorder %v1078, 0.0
        %vm1123 = vcmp.lt.f32.partialorder %v1080, 0.0
        %vm1124 = vcmp.lt.f32.partialorder %v1082, 0.0
        %vm1125 = vcmp.lt.f32.partialorder %v1084, 0.0
        %v1126 = vsub.f32 0.0, %v1102
        %v1127 = vsub.f32 0.0, %v1103
        %v1128 = vsub.f32 0.0, %v1104
        %v1129 = vsub.f32 0.0, %v1105
        %v1130 = vsub.f32 0.0, %v1106
        %v1131 = vsub.f32 0.0, %v1107
        %v1132 = vsub.f32 0.0, %v1108
        %v1133 = vsub.f32 0.0, %v1109
        %v1134 = vsel %vm1118, %v1126, 0.0
        %v1135 = vsel %vm1119, %v1127, 0.0
        %v1136 = vsel %vm1120, %v1128, 0.0
        %v1137 = vsel %vm1121, %v1129, 0.0
        %v1138 = vsel %vm1122, %v1130, 0.0
        %v1139 = vsel %vm1123, %v1131, 0.0
        %v1140 = vsel %vm1124, %v1132, 0.0
        %v1141 = vsel %vm1125, %v1133, 0.0
        %v1142 = vsel %vm1110, %v1102, %v1134
        %v1143 = vsel %vm1111, %v1103, %v1135
        %v1144 = vsel %vm1112, %v1104, %v1136
        %v1145 = vsel %vm1113, %v1105, %v1137
        %v1146 = vsel %vm1114, %v1106, %v1138
        %v1147 = vsel %vm1115, %v1107, %v1139
        %v1148 = vsel %vm1116, %v1108, %v1140
        %v1149 = vsel %vm1117, %v1109, %v1141
        %v1150 = vpack.c.bf16 %v1144, %v1142
        %v1151 = vpack.c.bf16 %v1145, %v1143
        %v1152 = vpack.c.bf16 %v1148, %v1146
        %v1153 = vpack.c.bf16 %v1149, %v1147
        %1154 = vmatprep.subr.bf16.mxu0 %v1151
        %1155 = vmatpush1.bf16.msra.mxu0 %v1150
        %1156 = vmatprep.subr.bf16.mxu0 %v1153
        %1157 = vmatpush1.bf16.msra.mxu0 %v1152
        %1158 = vmatprep.subr.bf16.mxu0 0
        %1159 = vmatpush1.bf16.msra.mxu0 0
        %1160 = vmatprep.subr.bf16.mxu0 0
        %1161 = vmatpush1.bf16.msra.mxu0 0
        %1162 = vmatprep.subr.bf16.mxu0 0
        %1163 = vmatpush1.bf16.msra.mxu0 0
        %1164 = vmatprep.subr.bf16.mxu0 0
        %1165 = vmatpush1.bf16.msra.mxu0 0
        %1166 = vmatprep.subr.bf16.mxu0 0
        %1167 = vmatpush1.bf16.msra.mxu0 0
        %1168 = vmatprep.subr.bf16.mxu0 0
        %1169 = vmatpush1.bf16.msra.mxu0 0
        %1170 = vmatprep.subr.bf16.mxu0 0
        %1171 = vmatpush1.bf16.msra.mxu0 0
        %1172 = vmatprep.subr.bf16.mxu0 0
        %1173 = vmatpush1.bf16.msra.mxu0 0
        %1174 = vmatprep.subr.bf16.mxu0 0
        %1175 = vmatpush1.bf16.msra.mxu0 0
        %1176 = vmatprep.subr.bf16.mxu0 0
        %1177 = vmatpush1.bf16.msra.mxu0 0
        %1178 = vmatprep.subr.bf16.mxu0 0
        %1179 = vmatpush1.bf16.msra.mxu0 0
        %1180 = vmatprep.subr.bf16.mxu0 0
        %1181 = vmatpush1.bf16.msra.mxu0 0
        %1182 = vmatprep.subr.bf16.mxu0 0
        %1183 = vmatpush1.bf16.msra.mxu0 0
        %1184 = vmatprep.subr.bf16.mxu0 0
        %1185 = vmatpush1.bf16.msra.mxu0 0
        %1186 = vmatprep.mubr.bf16.mxu0 0
        %1187 = vmatmul.mubr.bf16.gmra.mrb[0].mxu0 %v907
        %v1188 = vpop.f32.mrb[0].mxu0
        %v1189 = vadd.f32 %v816, %v1188
        %v1190 = vpop.f32.mrb[0].mxu0
        %v1191 = vadd.f32 %v817, %v1190
        %v1192 = vpop.f32.mrb[0].mxu0
        %v1193 = vadd.f32 %v818, %v1192
        %v1194 = vpop.f32.mrb[0].mxu0
        %v1195 = vadd.f32 %v819, %v1194
        %1196 = vmatprep.mubr.bf16.mxu0 0
        %1197 = vmatmul.mubr.bf16.gmra.mrb[0].mxu0 %v910
        %v1198 = vpop.f32.mrb[0].mxu0
        %v1199 = vadd.f32 %v820, %v1198
        %v1200 = vpop.f32.mrb[0].mxu0
        %v1201 = vadd.f32 %v821, %v1200
        %v1202 = vpop.f32.mrb[0].mxu0
        %v1203 = vadd.f32 %v822, %v1202
        %v1204 = vpop.f32.mrb[0].mxu0
        %v1205 = vadd.f32 %v823, %v1204
        %1206 = vdwg.mxu0
        %v1207 = vand.u32 2147483647, %v1189
        %v1208 = vand.u32 2147483647, %v1191
        %v1209 = vand.u32 2147483647, %v1193
        %v1210 = vand.u32 2147483647, %v1195
        %v1211 = vand.u32 2147483647, %v1199
        %v1212 = vand.u32 2147483647, %v1201
        %v1213 = vand.u32 2147483647, %v1203
        %v1214 = vand.u32 2147483647, %v1205
        %v1215 = vsub.f32 %v1207, %v814
        %v1216 = vsub.f32 %v1208, %v815
        %v1217 = vsub.f32 %v1209, %v814
        %v1218 = vsub.f32 %v1210, %v815
        %v1219 = vsub.f32 %v1211, %v814
        %v1220 = vsub.f32 %v1212, %v815
        %v1221 = vsub.f32 %v1213, %v814
        %v1222 = vsub.f32 %v1214, %v815
        %v1223 = vmax.f32 %v1215, 0.0
        %v1224 = vmax.f32 %v1216, 0.0
        %v1225 = vmax.f32 %v1217, 0.0
        %v1226 = vmax.f32 %v1218, 0.0
        %v1227 = vmax.f32 %v1219, 0.0
        %v1228 = vmax.f32 %v1220, 0.0
        %v1229 = vmax.f32 %v1221, 0.0
        %v1230 = vmax.f32 %v1222, 0.0
        %vm1231 = vcmp.gt.f32.partialorder %v1189, 0.0
        %vm1232 = vcmp.gt.f32.partialorder %v1191, 0.0
        %vm1233 = vcmp.gt.f32.partialorder %v1193, 0.0
        %vm1234 = vcmp.gt.f32.partialorder %v1195, 0.0
        %vm1235 = vcmp.gt.f32.partialorder %v1199, 0.0
        %vm1236 = vcmp.gt.f32.partialorder %v1201, 0.0
        %vm1237 = vcmp.gt.f32.partialorder %v1203, 0.0
        %vm1238 = vcmp.gt.f32.partialorder %v1205, 0.0
        %vm1239 = vcmp.lt.f32.partialorder %v1189, 0.0
        %vm1240 = vcmp.lt.f32.partialorder %v1191, 0.0
        %vm1241 = vcmp.lt.f32.partialorder %v1193, 0.0
        %vm1242 = vcmp.lt.f32.partialorder %v1195, 0.0
        %vm1243 = vcmp.lt.f32.partialorder %v1199, 0.0
        %vm1244 = vcmp.lt.f32.partialorder %v1201, 0.0
        %vm1245 = vcmp.lt.f32.partialorder %v1203, 0.0
        %vm1246 = vcmp.lt.f32.partialorder %v1205, 0.0
        %v1247 = vsub.f32 0.0, %v1223
        %v1248 = vsub.f32 0.0, %v1224
        %v1249 = vsub.f32 0.0, %v1225
        %v1250 = vsub.f32 0.0, %v1226
        %v1251 = vsub.f32 0.0, %v1227
        %v1252 = vsub.f32 0.0, %v1228
        %v1253 = vsub.f32 0.0, %v1229
        %v1254 = vsub.f32 0.0, %v1230
        %v1255 = vsel %vm1239, %v1247, 0.0
        %v1256 = vsel %vm1240, %v1248, 0.0
        %v1257 = vsel %vm1241, %v1249, 0.0
        %v1258 = vsel %vm1242, %v1250, 0.0
        %v1259 = vsel %vm1243, %v1251, 0.0
        %v1260 = vsel %vm1244, %v1252, 0.0
        %v1261 = vsel %vm1245, %v1253, 0.0
        %v1262 = vsel %vm1246, %v1254, 0.0
        %v1263 = vsel %vm1231, %v1223, %v1255
        %v1264 = vsel %vm1232, %v1224, %v1256
        %v1265 = vsel %vm1233, %v1225, %v1257
        %v1266 = vsel %vm1234, %v1226, %v1258
        %v1267 = vsel %vm1235, %v1227, %v1259
        %v1268 = vsel %vm1236, %v1228, %v1260
        %v1269 = vsel %vm1237, %v1229, %v1261
        %v1270 = vsel %vm1238, %v1230, %v1262
        %v1271 = vld [vmem:[%s10] sm:$0xf]
        %v1272 = vld [vmem:[%s10 + $0x4] sm:$0xf]
        %v1273 = vpack.c.bf16 %v1265, %v1263
        %v1274 = vpack.c.bf16 %v1266, %v1264
        %v1275 = vpack.c.bf16 %v1269, %v1267
        %v1276 = vpack.c.bf16 %v1270, %v1268
        %v1279 = vunpack.c.l.b16 %v1271
        %v1280 = vunpack.c.l.b16 %v1272
        %v1281 = vpack.c.b16 %v1280, %v1279
        %v1283 = vsel %vm633, %v1281, 0
        %1285 = vmatprep.subr.bf16.mxu0 %v1274
        %1286 = vmatpush1.bf16.msra.mxu0 %v1273
        %1287 = vmatprep.subr.bf16.mxu0 %v1276
        %1288 = vmatpush1.bf16.msra.mxu0 %v1275
        %1289 = vmatprep.subr.bf16.mxu0 0
        %1290 = vmatpush1.bf16.msra.mxu0 0
        %1291 = vmatprep.subr.bf16.mxu0 0
        %1292 = vmatpush1.bf16.msra.mxu0 0
        %1293 = vmatprep.subr.bf16.mxu0 0
        %1294 = vmatpush1.bf16.msra.mxu0 0
        %1295 = vmatprep.subr.bf16.mxu0 0
        %1296 = vmatpush1.bf16.msra.mxu0 0
        %1297 = vmatprep.subr.bf16.mxu0 0
        %1298 = vmatpush1.bf16.msra.mxu0 0
        %1299 = vmatprep.subr.bf16.mxu0 0
        %1300 = vmatpush1.bf16.msra.mxu0 0
        %1301 = vmatprep.subr.bf16.mxu0 0
        %1302 = vmatpush1.bf16.msra.mxu0 0
        %1303 = vmatprep.subr.bf16.mxu0 0
        %1304 = vmatpush1.bf16.msra.mxu0 0
        %1305 = vmatprep.subr.bf16.mxu0 0
        %1306 = vmatpush1.bf16.msra.mxu0 0
        %1307 = vmatprep.subr.bf16.mxu0 0
        %1308 = vmatpush1.bf16.msra.mxu0 0
        %1309 = vmatprep.subr.bf16.mxu0 0
        %1310 = vmatpush1.bf16.msra.mxu0 0
        %1311 = vmatprep.subr.bf16.mxu0 0
        %1312 = vmatpush1.bf16.msra.mxu0 0
        %1313 = vmatprep.subr.bf16.mxu0 0
        %1314 = vmatpush1.bf16.msra.mxu0 0
        %1315 = vmatprep.subr.bf16.mxu0 0
        %1316 = vmatpush1.bf16.msra.mxu0 0
        %1317 = vmatprep.mubr.bf16.mxu0 0
        %1318 = vmatmul.mubr.bf16.gmra.mrb[0].mxu0 %v1283
        %v1319 = vpop.f32.mrb[0].mxu0
        %v1320 = vadd.f32 0.0, %v1319
        %v1321 = vpop.f32.mrb[0].mxu0
        %v1322 = vadd.f32 0.0, %v1321
        %v1323 = vpop.f32.mrb[0].mxu0
        %v1324 = vadd.f32 0.0, %v1323
        %v1325 = vpop.f32.mrb[0].mxu0
        %v1326 = vadd.f32 0.0, %v1325
        %1327 = vdwg.mxu0
        %v1328 = vmax.f32 %v1320, -1.0
        %v1329 = vmax.f32 %v1322, -1.0
        %v1330 = vmax.f32 %v1324, -1.0
        %v1331 = vmax.f32 %v1326, -1.0
        %v1332 = vmin.f32 %v1328, 1.0
        %v1333 = vmin.f32 %v1329, 1.0
        %v1334 = vmin.f32 %v1330, 1.0
        %v1335 = vmin.f32 %v1331, 1.0
        %1336 = vst [vmem:[%s421] sm:$0xff] %v1332
        %1337 = vst [vmem:[%s421 + $0x8] sm:$0xff] %v1333
        %1338 = vst [vmem:[%s421 + $0x10] sm:$0xff] %v1334
        %1339 = vst [vmem:[%s421 + $0x18] sm:$0xff] %v1335
        %s1340 = sand.u32 %s268, 1
        %s1341 = sand.u32 %s268, 1
        %s1342 = smul.addr %s1341, 32
        %s1343 = scalar_lea.vmem [#allocation4], %s1342
        // Predicated region
        $region103: #{_lambda_.2} parent=97 // pred_check
          %p1344 = pneg %p278
        $region104: #{_lambda_.2} parent=97 // pred_check_branch
          %1346 = sbr.rel (%p1344) target = $region106
        $region105: #{_lambda_.2} parent=97 // pred_region
          %s1347 = smul.u32 2, %s24
          %s1348 = smul.addr %s1347, 8
          %s1349 = scalar_lea.vmem %s11, %s1348
          // Predicated region
          $region107: #{_lambda_.2} parent=105 // pred_check
            _
          $region108: #{_lambda_.2} parent=105 // pred_check_branch
            %1351 = sbr.rel (0) target = $region110
          $region109: #{_lambda_.2} parent=105 // pred_region
            // Predicated region
            $region111: #{_lambda_.2} parent=109 // pred_check
              _
            $region112: #{_lambda_.2} parent=109 // pred_check_branch
              %1353 = sbr.rel (0) target = $region114
            $region113: #{_lambda_.2} parent=109 // pred_region
              loop: start=0, step=1, limit=1
              $region115: #{_lambda_.2} parent=113 // loop_pre_header
                _
              $region116: #{_lambda_.2} parent=113 // loop_header
                %s1355 = sphi 0, %s1359
                %p1356 = scmp.ge.s32.totalorder %s1355, 1
                %s1360 = sphi %s1343, %s1343
                %s1361 = sphi %s1349, %s1349
              $region117: #{_lambda_.2} parent=113 // loop_header_branch
                %1358 = sbr.rel (%p1356) target = $region121
              $region118: #{_lambda_.2} parent=113 // loop_body
                %v1362 = vld [vmem:[%s1360] sm:$0xff]
                %1363 = vst [vmem:[%s1361] sm:$0xff] %v1362
                %v1364 = vld [vmem:[%s1360 + $0x8] sm:$0xff]
                %1365 = vst [vmem:[%s1361 + $0x8] sm:$0xff] %v1364
                %v1366 = vld [vmem:[%s1360 + $0x10] sm:$0xff]
                %1367 = vst [vmem:[%s1361 + $0x20] sm:$0xff] %v1366
                %v1368 = vld [vmem:[%s1360 + $0x18] sm:$0xff]
                %1369 = vst [vmem:[%s1361 + $0x28] sm:$0xff] %v1368
              $region119: #{_lambda_.2} parent=113 // loop_footer
                %s1359 = sadd.s32 1, %s1355
              $region120: #{_lambda_.2} parent=113 // loop_footer_branch
                %1354 = sbr.rel target = $region116
              $region121: #{_lambda_.2} parent=113 // loop_exit
                _
            $region114: #{_lambda_.2} parent=109 // pred_fallthru
              _
            // Predicated region
            $region122: #{_lambda_.2} parent=109 // pred_check
              _
            $region123: #{_lambda_.2} parent=109 // pred_check_branch
              %1371 = sbr.rel target = $region125
            $region124: #{_lambda_.2} parent=109 // pred_region
              _
            $region125: #{_lambda_.2} parent=109 // pred_fallthru
              _
          $region110: #{_lambda_.2} parent=105 // pred_fallthru
            _
          %1372 = vnop
        $region106: #{_lambda_.2} parent=97 // pred_fallthru
          _
      $region98: #{_lambda_.2} parent=5 // pred_fallthru
        _
      %p1373 = scmp.le.s32.totalorder 2, %s19
      // Predicated region
      $region126: #{_lambda_.2} parent=5 // pred_check
        %p1374 = pneg %p1373
      $region127: #{_lambda_.2} parent=5 // pred_check_branch
        %1376 = sbr.rel (%p1374) target = $region129
      $region128: #{_lambda_.2} parent=5 // pred_region
        %s1377 = ssub.s32 %s19, 2
        // Predicated region
        $region130: #{_lambda_.2} parent=128 // pred_check
          %p1378 = pneg %p284
        $region131: #{_lambda_.2} parent=128 // pred_check_branch
          %1380 = sbr.rel (%p1378) target = $region133
        $region132: #{_lambda_.2} parent=128 // pred_region
          %s1381 = sand.u32 %s269, 1
          %s1382 = sand.u32 %s269, 1
          %s1383 = smul.addr %s1382, 32
          %s1384 = scalar_lea.vmem [#allocation4], %s1383
        $region133: #{_lambda_.2} parent=128 // pred_fallthru
          _
      $region129: #{_lambda_.2} parent=5 // pred_fallthru
        _
    $region6: #{_lambda_.2} parent=1 // loop_footer
      %s23 = sadd.s32 1, %s19
    $region7: #{_lambda_.2} parent=1 // loop_footer_branch
      %18 = sbr.rel target = $region3
    $region8: #{_lambda_.2} parent=1 // loop_exit
      _

</llo_original>
